<compile_context>
chip_gen: v7x
topology: tpu7x:2x2x1
jax: 0.10.0
libtpu: 0.0.40
codegen_flags: <defaults>
</compile_context>

<pallas_src>
import functools

import jax
import jax.numpy as jnp
from jax import lax
from jax.experimental import pallas as pl
from jax.experimental.pallas import tpu as pltpu


def _supcon_tile_kernel(labels_col_ref, labels_row_ref, q_ref, kT_ref, out_ref, *,
                        temperature, tq, n_valid):
    n_pad = kT_ref.shape[1]
    inv_t = 1.0 / temperature
    row0 = pl.program_id(0) * tq

    # ---- anchor_dot_contrast / T on the MXU: bf16 [TQ, D] x [D, N] -> f32 ----
    adc = lax.dot_general(q_ref[...], kT_ref[...], (((1,), (0,)), ((), ())),
                          preferred_element_type=jnp.float32) * inv_t      # [TQ, N]

    # ---- numerically stable logits (max over the full row, like torch) ----
    logits_max = jnp.max(adc, axis=1, keepdims=True)                       # [TQ, 1]
    logits = adc - logits_max
    exp_logits = jnp.exp(logits)                                           # f32 (v5e EUP)

    # ---- masks: bool compares + selects, no f32 mask tensors ----
    col = lax.broadcasted_iota(jnp.int32, (tq, n_pad), 1)
    row = lax.broadcasted_iota(jnp.int32, (tq, n_pad), 0)
    is_self = col == (row + row0)                                          # diagonal
    col_valid = col < n_valid                                              # real columns
    not_self_valid = col_valid & (~is_self)
    same = labels_col_ref[...] == labels_row_ref[...]                      # [TQ, N] bool
    pos = same & not_self_valid

    # denominator = sum over real, off-diagonal columns of exp(logits)
    # (NOT rowsum - exp(diag): the diagonal exp dominates -> cancellation)
    denom = jnp.sum(jnp.where(not_self_valid, exp_logits, 0.0),
                    axis=1, keepdims=True)                                 # [TQ, 1]
    log_denom = jnp.log(denom)

    # sum over positives of log_probs = sum_pos(logits) - num_pos * log(denom)
    sum_pos_logits = jnp.sum(jnp.where(pos, logits, 0.0), axis=1, keepdims=True)
    num_pos = jnp.sum(jnp.where(pos, 1.0, 0.0), axis=1, keepdims=True)
    sum_pos_logprob = sum_pos_logits - num_pos * log_denom

    row_idx = lax.broadcasted_iota(jnp.int32, (tq, 1), 0)
    row_valid = (num_pos > 0.0) & ((row_idx + row0) < n_valid)
    per_row = jnp.where(row_valid, sum_pos_logprob / jnp.maximum(num_pos, 1.0), 0.0)

    tile_sum = jnp.sum(per_row)                                            # scalar
    tile_cnt = jnp.sum(jnp.where(row_valid, 1.0, 0.0))                     # scalar

    # lane-dense partial write: lane 0 = sum of per-row mean log-probs, lane 1 = count
    lane = lax.broadcasted_iota(jnp.int32, (1, 8, 128), 2)
    out_ref[...] = jnp.where(lane == 0, tile_sum,
                             jnp.where(lane == 1, tile_cnt, 0.0))


def _vmem_capacity_bytes():
    try:
        info = pltpu.get_tpu_info()
        cap = getattr(info, "vmem_capacity_bytes", None)
        if cap:
            return int(cap)
    except Exception:
        pass
    return 64 * 1024 * 1024  # conservative (v7x-sized) fallback


def _vmem_estimate(tq, n_pad, d):
    # Honest accounting: constant-index resident blocks are still double-buffered.
    return (
        2 * (2 * d * n_pad)          # bf16 [D, N] key slab, 2 buffers
        + 2 * (8 * n_pad * 4)        # int32 [1, N] label row, sublane-padded, 2 buffers
        + 2 * (2 * tq * d)           # bf16 [TQ, D] query tile, 2 buffers
        + 2 * (tq * 128 * 4)         # int32 [TQ, 1] label tile, lane-padded, 2 buffers
        + 2 * (8 * 128 * 4)          # partial-output tile, 2 buffers
        + 8 * tq * n_pad * 4         # ~8 live f32 [TQ, N] compute strips
        + (2 << 20)                  # slack
    )


def _choose_tiling(n, max_tq, usable_vmem, d):
    # Pad N up to >= 2 tiles of a 128-multiple TQ (never TQ in {8..64}; never 1 tile).
    n128 = max(256, -(-n // 128) * 128)
    for tq in (512, 256, 128):
        if tq > max_tq:
            continue
        if n128 < 2 * tq:
            continue
        n_pad = -(-n128 // tq) * tq
        if _vmem_estimate(tq, n_pad, d) <= usable_vmem:
            return tq, n_pad
    return 128, n128


def supcon_loss(features, labels, *, temperature=0.07):
    """features: [bsz, n_views, ...] ; labels: [bsz] integer class ids."""
    if features.ndim < 3:
        raise ValueError("`features` needs to be [bsz, n_views, ...]")
    bsz, n_views = features.shape[0], features.shape[1]
    feats = features.reshape(bsz, n_views, -1).astype(jnp.float32)
    d = feats.shape[-1]

    # torch.cat(torch.unbind(features, dim=1), dim=0): view-major stacking.
    feats_cat = jnp.concatenate([feats[:, v] for v in range(n_views)], axis=0)  # [N, D]
    n = feats_cat.shape[0]

    # Reference module hard-codes labels.repeat(2) (assumes n_views == 2).
    labels_rep = jnp.tile(labels.astype(jnp.int32), 2)
    if labels_rep.shape[0] != n:
        raise ValueError("Num of labels does not match num of features")

    # ---- hoisted L2 normalization (F.normalize p=2) + bf16 cast, once, fused by XLA ----
    inv_norm = lax.rsqrt(jnp.maximum(jnp.sum(feats_cat * feats_cat, axis=1,
                                             keepdims=True), 1e-24))
    feats_n = (feats_cat * inv_norm).astype(jnp.bfloat16)                   # [N, D] bf16

    # ---- generation-aware tiling & VMEM budget ----
    vmem_cap = _vmem_capacity_bytes()
    usable = int(0.75 * vmem_cap)                  # ~48 MiB/TC on v7x, ~96 MiB on v5e/v6e
    max_tq = 512 if vmem_cap >= 96 * 1024 * 1024 else 256
    tq, n_pad = _choose_tiling(n, max_tq, usable, d)
    num_tiles = n_pad // tq

    pad = n_pad - n
    if pad:
        # Padding rows/cols are excluded exactly inside the kernel (col/row validity
        # masks), so the pad label value is irrelevant; zero features keep exp finite.
        feats_n = jnp.pad(feats_n, ((0, pad), (0, 0)))
        labels_rep = jnp.pad(labels_rep, (0, pad))

    k_t = feats_n.T                                                         # [D, N] bf16
    labels_col = labels_rep.reshape(n_pad, 1)                               # int32 [N, 1]
    labels_row = labels_rep.reshape(1, n_pad)                               # int32 [1, N]

    vmem_limit = int(min(max(_vmem_estimate(tq, n_pad, d), 32 * 1024 * 1024), usable))

    kernel = functools.partial(_supcon_tile_kernel,
                               temperature=float(temperature), tq=tq, n_valid=n)

    cost = pl.CostEstimate(
        flops=2 * n_pad * n_pad * d,
        transcendentals=n_pad * n_pad,
        bytes_accessed=2 * n_pad * d + 2 * n_pad * d + num_tiles * 8 * 128 * 4,
    )

    partials = pl.pallas_call(
        kernel,
        out_shape=jax.ShapeDtypeStruct((num_tiles, 8, 128), jnp.float32),
        grid=(num_tiles,),
        in_specs=[
            pl.BlockSpec((tq, 1), lambda i: (i, 0)),       # query-tile labels (column)
            pl.BlockSpec((1, n_pad), lambda i: (0, 0)),    # all labels (row), resident
            pl.BlockSpec((tq, d), lambda i: (i, 0)),       # bf16 query tile (pipelined)
            pl.BlockSpec((d, n_pad), lambda i: (0, 0)),    # bf16 [D, N] key slab, resident
        ],
        out_specs=pl.BlockSpec((1, 8, 128), lambda i: (i, 0, 0)),
        compiler_params=pltpu.CompilerParams(
            dimension_semantics=("parallel",),
            vmem_limit_bytes=vmem_limit),
        cost_estimate=cost,
    )(labels_col, labels_row, feats_n, k_t)

    loss_sum = jnp.sum(partials[:, 0, 0])
    valid_cnt = jnp.sum(partials[:, 0, 1])
    return -loss_sum / jnp.maximum(valid_cnt, 1.0)


def _supcon_loss_ref(features, labels, *, temperature=0.07, matmul_dtype=jnp.float32):
    """Pure-JAX mirror of the PyTorch forward (masked formulation) for validation.
    matmul_dtype=bfloat16 mirrors the kernel's MXU precision; float32 mirrors torch."""
    bsz, n_views = features.shape[0], features.shape[1]
    feats = features.reshape(bsz, n_views, -1).astype(jnp.float32)
    f = jnp.concatenate([feats[:, v] for v in range(n_views)], axis=0)
    f = f / jnp.maximum(jnp.linalg.norm(f, axis=1, keepdims=True), 1e-12)
    n = f.shape[0]
    lab = jnp.tile(labels, 2).reshape(-1, 1)
    mask = (lab == lab.T).astype(jnp.float32)
    fm = f.astype(matmul_dtype)
    adc = jnp.dot(fm, fm.T, preferred_element_type=jnp.float32).astype(jnp.float32)
    adc = adc / temperature
    logits = adc - jnp.max(adc, axis=1, keepdims=True)
    exp_logits = jnp.exp(logits)
    logits_mask = 1.0 - jnp.eye(n, dtype=jnp.float32)
    pos = mask * logits_mask
    neg = 1.0 - mask
    num_pos = jnp.sum(pos, axis=1)
    denom = (jnp.sum(exp_logits * neg, axis=1, keepdims=True)
             + jnp.sum(exp_logits * pos, axis=1, keepdims=True))
    log_probs = logits - jnp.log(denom)
    row = jnp.sum(log_probs * pos, axis=1)
    valid = num_pos > 0
    per_row = jnp.where(valid, row / jnp.where(valid, num_pos, 1.0), 0.0)
    return -jnp.sum(per_row) / jnp.maximum(jnp.sum(valid.astype(jnp.float32)), 1.0)


if __name__ == "__main__":
    key = jax.random.PRNGKey(0)
    k_feat, k_lab = jax.random.split(key)

    bsz, n_views, feat_dim = 8, 2, 128
    features = jax.random.normal(k_feat, (bsz, n_views, feat_dim), dtype=jnp.float32)
    labels = jax.random.randint(k_lab, (bsz,), 0, 4, dtype=jnp.int32)

    loss = supcon_loss(features, labels, temperature=0.07)
    loss = jax.block_until_ready(loss)

    # tight check vs. a reference that mirrors the kernel's bf16 MXU precision
    ref_bf16 = _supcon_loss_ref(features, labels, temperature=0.07,
                                matmul_dtype=jnp.bfloat16)
    # looser check vs. the full-f32 (torch-equivalent) reference
    ref_f32 = _supcon_loss_ref(features, labels, temperature=0.07,
                               matmul_dtype=jnp.float32)

    assert bool(jnp.isfinite(loss)), loss
    assert jnp.allclose(loss, ref_bf16, rtol=5e-3, atol=5e-3), (loss, ref_bf16)
    assert jnp.allclose(loss, ref_f32, rtol=5e-2, atol=5e-2), (loss, ref_f32)

    print("KERNEL_OK")
</pallas_src>

<mosaic_0001>
module attributes {stable_mosaic.version = 11 : i64} {
  func.func @_supcon_tile_kernel(%arg0: i32, %arg1: memref<128x1xi32, #tpu.memory_space<vmem>>, %arg2: memref<1x256xi32, #tpu.memory_space<vmem>>, %arg3: memref<128x128xbf16, #tpu.memory_space<vmem>>, %arg4: memref<128x256xbf16, #tpu.memory_space<vmem>>, %arg5: memref<1x8x128xf32, #tpu.memory_space<vmem>>) attributes {dimension_semantics = [#tpu.dimension_semantics<parallel>], iteration_bounds = array<i64: 2>, scalar_prefetch = 0 : i64, scratch_operands = 0 : i64, tpu.core_type = #tpu.core_type<tc>, window_params = [{transform_indices = @transform_0, window_bounds = array<i64: 128, 1>}, {pipeline_mode = #tpu.pipeline_mode<synchronous>, transform_indices = @transform_1, window_bounds = array<i64: 1, 256>}, {transform_indices = @transform_2, window_bounds = array<i64: 128, 128>}, {pipeline_mode = #tpu.pipeline_mode<synchronous>, transform_indices = @transform_3, window_bounds = array<i64: 128, 256>}, {transform_indices = @transform_4, window_bounds = array<i64: 1, 8, 128>}]} {
    %c128_i32 = arith.constant 128 : i32
    %0 = arith.muli %arg0, %c128_i32 : i32
    %c0 = arith.constant 0 : index
    %c0_0 = arith.constant 0 : index
    %1 = vector.load %arg3[%c0, %c0_0] : memref<128x128xbf16, #tpu.memory_space<vmem>>, vector<128x128xbf16>
    %c0_1 = arith.constant 0 : index
    %c0_2 = arith.constant 0 : index
    %2 = vector.load %arg4[%c0_1, %c0_2] : memref<128x256xbf16, #tpu.memory_space<vmem>>, vector<128x256xbf16>
    %cst = arith.constant dense<0.000000e+00> : vector<128x256xf32>
    %3 = tpu.matmul %1, %2, %cst {dimension_numbers = #tpu.dot_dimension_numbers<[1], [0], [0], [1], [0, 0, 1, 1], [], []>} : vector<128x128xbf16>, vector<128x256xbf16>, vector<128x256xf32> -> vector<128x256xf32>
    %cst_3 = arith.constant 14.2857141 : f32
    %4 = vector.broadcast %cst_3 : f32 to vector<128x256xf32>
    %5 = arith.mulf %3, %4 : vector<128x256xf32>
    %cst_4 = arith.constant dense<0xFF800000> : vector<128xf32>
    %6 = vector.multi_reduction <maximumf>, %5, %cst_4 [1] : vector<128x256xf32> to vector<128xf32>
    %7 = vector.shape_cast %6 : vector<128xf32> to vector<128x1xf32>
    %8 = vector.broadcast %7 : vector<128x1xf32> to vector<128x256xf32>
    %9 = arith.subf %5, %8 : vector<128x256xf32>
    %10 = math.exp %9 : vector<128x256xf32>
    %11 = tpu.iota {dimensions = array<i32: 1>} : vector<128x256xi32>
    %12 = tpu.iota {dimensions = array<i32: 0>} : vector<128x256xi32>
    %13 = vector.broadcast %0 : i32 to vector<128x256xi32>
    %14 = arith.addi %12, %13 : vector<128x256xi32>
    %15 = arith.cmpi eq, %11, %14 : vector<128x256xi32>
    %c16_i32 = arith.constant 16 : i32
    %16 = vector.broadcast %c16_i32 : i32 to vector<128x256xi32>
    %17 = arith.cmpi slt, %11, %16 : vector<128x256xi32>
    %cst_5 = arith.constant dense<true> : vector<128x256xi1>
    %18 = arith.xori %15, %cst_5 : vector<128x256xi1>
    %19 = arith.andi %17, %18 : vector<128x256xi1>
    %c0_6 = arith.constant 0 : index
    %c0_7 = arith.constant 0 : index
    %20 = vector.load %arg1[%c0_6, %c0_7] : memref<128x1xi32, #tpu.memory_space<vmem>>, vector<128x1xi32>
    %c0_8 = arith.constant 0 : index
    %c0_9 = arith.constant 0 : index
    %21 = vector.load %arg2[%c0_8, %c0_9] : memref<1x256xi32, #tpu.memory_space<vmem>>, vector<1x256xi32>
    %22 = vector.broadcast %20 : vector<128x1xi32> to vector<128x256xi32>
    %23 = vector.broadcast %21 : vector<1x256xi32> to vector<128x256xi32>
    %24 = arith.cmpi eq, %22, %23 : vector<128x256xi32>
    %25 = arith.andi %24, %19 : vector<128x256xi1>
    %cst_10 = arith.constant 0.000000e+00 : f32
    %26 = vector.broadcast %cst_10 : f32 to vector<128x256xf32>
    %27 = arith.select %19, %10, %26 : vector<128x256xi1>, vector<128x256xf32>
    %cst_11 = arith.constant dense<0.000000e+00> : vector<128xf32>
    %28 = vector.multi_reduction <add>, %27, %cst_11 [1] : vector<128x256xf32> to vector<128xf32>
    %29 = vector.shape_cast %28 : vector<128xf32> to vector<128x1xf32>
    %30 = math.log %29 : vector<128x1xf32>
    %cst_12 = arith.constant 0.000000e+00 : f32
    %31 = vector.broadcast %cst_12 : f32 to vector<128x256xf32>
    %32 = arith.select %25, %9, %31 : vector<128x256xi1>, vector<128x256xf32>
    %cst_13 = arith.constant dense<0.000000e+00> : vector<128xf32>
    %33 = vector.multi_reduction <add>, %32, %cst_13 [1] : vector<128x256xf32> to vector<128xf32>
    %34 = vector.shape_cast %33 : vector<128xf32> to vector<128x1xf32>
    %cst_14 = arith.constant 1.000000e+00 : f32
    %cst_15 = arith.constant 0.000000e+00 : f32
    %35 = vector.broadcast %cst_14 : f32 to vector<128x256xf32>
    %36 = vector.broadcast %cst_15 : f32 to vector<128x256xf32>
    %37 = arith.select %25, %35, %36 : vector<128x256xi1>, vector<128x256xf32>
    %cst_16 = arith.constant dense<0.000000e+00> : vector<128xf32>
    %38 = vector.multi_reduction <add>, %37, %cst_16 [1] : vector<128x256xf32> to vector<128xf32>
    %39 = vector.shape_cast %38 : vector<128xf32> to vector<128x1xf32>
    %40 = arith.mulf %39, %30 : vector<128x1xf32>
    %41 = arith.subf %34, %40 : vector<128x1xf32>
    %42 = tpu.iota {dimensions = array<i32: 0>} : vector<128x1xi32>
    %cst_17 = arith.constant 0.000000e+00 : f32
    %43 = vector.broadcast %cst_17 : f32 to vector<128x1xf32>
    %44 = arith.cmpf ogt, %39, %43 : vector<128x1xf32>
    %45 = vector.broadcast %0 : i32 to vector<128x1xi32>
    %46 = arith.addi %42, %45 : vector<128x1xi32>
    %c16_i32_18 = arith.constant 16 : i32
    %47 = vector.broadcast %c16_i32_18 : i32 to vector<128x1xi32>
    %48 = arith.cmpi slt, %46, %47 : vector<128x1xi32>
    %49 = arith.andi %44, %48 : vector<128x1xi1>
    %cst_19 = arith.constant 1.000000e+00 : f32
    %50 = vector.broadcast %cst_19 : f32 to vector<128x1xf32>
    %51 = arith.maximumf %39, %50 : vector<128x1xf32>
    %52 = arith.divf %41, %51 : vector<128x1xf32>
    %cst_20 = arith.constant 0.000000e+00 : f32
    %53 = vector.broadcast %cst_20 : f32 to vector<128x1xf32>
    %54 = arith.select %49, %52, %53 : vector<128x1xi1>, vector<128x1xf32>
    %55 = vector.shape_cast %54 : vector<128x1xf32> to vector<1x128x1xf32>
    %cst_21 = arith.constant dense<0.000000e+00> : vector<1xf32>
    %56 = vector.multi_reduction <add>, %55, %cst_21 [1, 2] : vector<1x128x1xf32> to vector<1xf32>
    %57 = vector.shape_cast %56 : vector<1xf32> to vector<1x1x1xf32>
    %58 = vector.extract %57[0, 0, 0] : f32 from vector<1x1x1xf32>
    %cst_22 = arith.constant 1.000000e+00 : f32
    %cst_23 = arith.constant 0.000000e+00 : f32
    %59 = vector.broadcast %cst_22 : f32 to vector<128x1xf32>
    %60 = vector.broadcast %cst_23 : f32 to vector<128x1xf32>
    %61 = arith.select %49, %59, %60 : vector<128x1xi1>, vector<128x1xf32>
    %62 = vector.shape_cast %61 : vector<128x1xf32> to vector<1x128x1xf32>
    %cst_24 = arith.constant dense<0.000000e+00> : vector<1xf32>
    %63 = vector.multi_reduction <add>, %62, %cst_24 [1, 2] : vector<1x128x1xf32> to vector<1xf32>
    %64 = vector.shape_cast %63 : vector<1xf32> to vector<1x1x1xf32>
    %65 = vector.extract %64[0, 0, 0] : f32 from vector<1x1x1xf32>
    %66 = tpu.iota {dimensions = array<i32: 2>} : vector<1x8x128xi32>
    %c0_i32 = arith.constant 0 : i32
    %67 = vector.broadcast %c0_i32 : i32 to vector<1x8x128xi32>
    %68 = arith.cmpi eq, %66, %67 : vector<1x8x128xi32>
    %c1_i32 = arith.constant 1 : i32
    %69 = vector.broadcast %c1_i32 : i32 to vector<1x8x128xi32>
    %70 = arith.cmpi eq, %66, %69 : vector<1x8x128xi32>
    %cst_25 = arith.constant 0.000000e+00 : f32
    %71 = vector.broadcast %65 : f32 to vector<1x8x128xf32>
    %72 = vector.broadcast %cst_25 : f32 to vector<1x8x128xf32>
    %73 = arith.select %70, %71, %72 : vector<1x8x128xi1>, vector<1x8x128xf32>
    %74 = vector.broadcast %58 : f32 to vector<1x8x128xf32>
    %75 = arith.select %68, %74, %73 : vector<1x8x128xi1>, vector<1x8x128xf32>
    %c0_26 = arith.constant 0 : index
    %c0_27 = arith.constant 0 : index
    %c0_28 = arith.constant 0 : index
    %76 = vector.load %arg5[%c0_26, %c0_27, %c0_28] : memref<1x8x128xf32, #tpu.memory_space<vmem>>, vector<1x8x128xf32>
    tpu.vector_store %arg5[%c0_26, %c0_27, %c0_28], %75 {strides = array<i32>} : memref<1x8x128xf32, #tpu.memory_space<vmem>>, vector<1x8x128xf32>,
    return
  }
  func.func @transform_0(%arg0: i32) -> (i32, i32) {
    %c0_i32 = arith.constant 0 : i32
    %c0_i32_0 = arith.constant 0 : i32
    return %arg0, %c0_i32 : i32, i32
  }
  func.func @transform_1(%arg0: i32) -> (i32, i32) {
    %c0_i32 = arith.constant 0 : i32
    %c0_i32_0 = arith.constant 0 : i32
    %c0_i32_1 = arith.constant 0 : i32
    return %c0_i32, %c0_i32_0 : i32, i32
  }
  func.func @transform_2(%arg0: i32) -> (i32, i32) {
    %c0_i32 = arith.constant 0 : i32
    %c0_i32_0 = arith.constant 0 : i32
    return %arg0, %c0_i32 : i32, i32
  }
  func.func @transform_3(%arg0: i32) -> (i32, i32) {
    %c0_i32 = arith.constant 0 : i32
    %c0_i32_0 = arith.constant 0 : i32
    %c0_i32_1 = arith.constant 0 : i32
    return %c0_i32, %c0_i32_0 : i32, i32
  }
  func.func @transform_4(%arg0: i32) -> (i32, i32, i32) {
    %c0_i32 = arith.constant 0 : i32
    %c0_i32_0 = arith.constant 0 : i32
    %c0_i32_1 = arith.constant 0 : i32
    return %arg0, %c0_i32, %c0_i32_0 : i32, i32, i32
  }
}

</mosaic_0001>

<llo_original>
// kernel: tpu_custom_call.1
$region0: #{tpu_custom_call.1}
  #allocation0 [shape = 'u32[]', space=smem, size = 0x4, offset = 0x4, fixed_abs, tag = 'smem constant byte address 0x4 - core index']
  #allocation1 [shape = 'u32[144,128]{1,0:T(1,128)}', space=vmem, size = 0x12000, scoped, tag = 'internal scratch']
  %s0 = inlined_call_operand.vmem [shape: s32[256,1], index: 0, kind: input, shape index: {}]
  %s1 = inlined_call_operand.vmem [shape: s32[1,256], index: 1, kind: input, shape index: {}]
  %s2 = inlined_call_operand.vmem [shape: bf16[256,128], index: 2, kind: input, shape index: {}]
  %s3 = inlined_call_operand.vmem [shape: bf16[128,256], index: 3, kind: input, shape index: {}]
  %s4 = inlined_call_operand.hbm [shape: f32[2,8,128], index: 4, kind: output, shape index: {}]
  %s5 = sld [smem:[#allocation0]]
  $region49: #{tpu_custom_call.1} parent=0
    _
  %s7 = ssub.s32 1, %s5
  %s8 = scalar_select 0, %s7, %s5
  $region1: #{tpu_custom_call.1} parent=0
    #allocation2 [shape = 'u8[8192]{0}', space=vmem, size = 0x2000, scoped, tag = 'output window, operand 0']
    #allocation3 [shape = 's32[2]{0}', space=sflag, size = 0x8, scoped, tag = 'scoped memory for tpu_custom_call.1']
    %9 = vsyncpa [#allocation3], 0
    %s10 = scalar_lea.sflag [#allocation3], 1
    %11 = vsyncpa %s10, 0
    loop: start=0, step=1, limit=4
    $region2: #{tpu_custom_call.1} parent=1 // loop_pre_header
      _
    $region3: #{tpu_custom_call.1} parent=1 // loop_header
      %s13 = sphi 0, %s17
      %p14 = scmp.ge.s32.totalorder %s13, 4
      %s23 = sphi 0, %s25
      %s26 = sphi 0, %s23
      %s27 = sphi 0, %s26
      %s43 = sphi 0, %s27
      %s47 = sphi 0, %s47
      %s49 = sphi 0, %s47
      %s50 = sphi 0, %s49
      %s64 = sphi 0, %s50
      %s70 = sphi 0, %s72
      %s73 = sphi 0, %s70
      %s74 = sphi 0, %s73
      %s90 = sphi 0, %s74
      %s94 = sphi 0, %s94
      %s96 = sphi 0, %s94
      %s97 = sphi 0, %s96
      %s111 = sphi 0, %s97
      %s117 = sphi 0, %s119
      %s120 = sphi 0, %s117
      %s121 = sphi 0, %s120
      %s137 = sphi 0, %s121
    $region4: #{tpu_custom_call.1} parent=1 // loop_header_branch
      %16 = sbr.rel (%p14) target = $region8
    $region5: #{tpu_custom_call.1} parent=1 // loop_body
      %s18 = ssub.s32 %s13, 1
      %s19 = ssub.s32 %s13, 2
      %s20 = sadd.s32 %s13, 1
      %s21 = ssub.s32 %s13, %s20
      %p22 = scmp.eq.s32.totalorder %s21, 0
      %s24 = sadd.s32 %s23, 1
      %s25 = scalar_select %p22, %s23, %s24
      %p28 = pneg %p22
      %p29 = scmp.eq.s32.totalorder %s13, 1
      %p30 = por %p28, %p29
      %p31 = scmp.ne.s32.totalorder %s23, %s26
      %p32 = scmp.eq.s32.totalorder %s13, 0
      %p33 = por %p31, %p32
      %p34 = scmp.ne.s32.totalorder %s23, %s26
      %p35 = scmp.eq.s32.totalorder %s18, 1
      %p36 = por %p34, %p35
      %p37 = scmp.ne.s32.totalorder %s26, %s27
      %p38 = scmp.eq.s32.totalorder %s18, 0
      %p39 = por %p37, %p38
      %p40 = scmp.ne.s32.totalorder %s26, %s27
      %p41 = scmp.eq.s32.totalorder %s19, 1
      %p42 = por %p40, %p41
      %p44 = scmp.ne.s32.totalorder %s27, %s43
      %p45 = scmp.eq.s32.totalorder %s19, 0
      %p46 = por %p44, %p45
      %s48 = sadd.s32 %s47, 1
      %p51 = scmp.eq.s32.totalorder %s13, 1
      %p52 = scmp.ne.s32.totalorder %s47, %s49
      %p53 = scmp.eq.s32.totalorder %s13, 0
      %p54 = por %p52, %p53
      %p55 = scmp.ne.s32.totalorder %s47, %s49
      %p56 = scmp.eq.s32.totalorder %s18, 1
      %p57 = por %p55, %p56
      %p58 = scmp.ne.s32.totalorder %s49, %s50
      %p59 = scmp.eq.s32.totalorder %s18, 0
      %p60 = por %p58, %p59
      %p61 = scmp.ne.s32.totalorder %s49, %s50
      %p62 = scmp.eq.s32.totalorder %s19, 1
      %p63 = por %p61, %p62
      %p65 = scmp.ne.s32.totalorder %s50, %s64
      %p66 = scmp.eq.s32.totalorder %s19, 0
      %p67 = por %p65, %p66
      %s68 = ssub.s32 %s13, %s20
      %p69 = scmp.eq.s32.totalorder %s68, 0
      %s71 = sadd.s32 %s70, 1
      %s72 = scalar_select %p69, %s70, %s71
      %p75 = pneg %p69
      %p76 = scmp.eq.s32.totalorder %s13, 1
      %p77 = por %p75, %p76
      %p78 = scmp.ne.s32.totalorder %s70, %s73
      %p79 = scmp.eq.s32.totalorder %s13, 0
      %p80 = por %p78, %p79
      %p81 = scmp.ne.s32.totalorder %s70, %s73
      %p82 = scmp.eq.s32.totalorder %s18, 1
      %p83 = por %p81, %p82
      %p84 = scmp.ne.s32.totalorder %s73, %s74
      %p85 = scmp.eq.s32.totalorder %s18, 0
      %p86 = por %p84, %p85
      %p87 = scmp.ne.s32.totalorder %s73, %s74
      %p88 = scmp.eq.s32.totalorder %s19, 1
      %p89 = por %p87, %p88
      %p91 = scmp.ne.s32.totalorder %s74, %s90
      %p92 = scmp.eq.s32.totalorder %s19, 0
      %p93 = por %p91, %p92
      %s95 = sadd.s32 %s94, 1
      %p98 = scmp.eq.s32.totalorder %s13, 1
      %p99 = scmp.ne.s32.totalorder %s94, %s96
      %p100 = scmp.eq.s32.totalorder %s13, 0
      %p101 = por %p99, %p100
      %p102 = scmp.ne.s32.totalorder %s94, %s96
      %p103 = scmp.eq.s32.totalorder %s18, 1
      %p104 = por %p102, %p103
      %p105 = scmp.ne.s32.totalorder %s96, %s97
      %p106 = scmp.eq.s32.totalorder %s18, 0
      %p107 = por %p105, %p106
      %p108 = scmp.ne.s32.totalorder %s96, %s97
      %p109 = scmp.eq.s32.totalorder %s19, 1
      %p110 = por %p108, %p109
      %p112 = scmp.ne.s32.totalorder %s97, %s111
      %p113 = scmp.eq.s32.totalorder %s19, 0
      %p114 = por %p112, %p113
      %s115 = ssub.s32 %s13, %s20
      %p116 = scmp.eq.s32.totalorder %s115, 0
      %s118 = sadd.s32 %s117, 1
      %s119 = scalar_select %p116, %s117, %s118
      %p122 = pneg %p116
      %p123 = scmp.eq.s32.totalorder %s13, 1
      %p124 = por %p122, %p123
      %p125 = scmp.ne.s32.totalorder %s117, %s120
      %p126 = scmp.eq.s32.totalorder %s13, 0
      %p127 = por %p125, %p126
      %p128 = scmp.ne.s32.totalorder %s117, %s120
      %p129 = scmp.eq.s32.totalorder %s18, 1
      %p130 = por %p128, %p129
      %p131 = scmp.ne.s32.totalorder %s120, %s121
      %p132 = scmp.eq.s32.totalorder %s18, 0
      %p133 = por %p131, %p132
      %p134 = scmp.ne.s32.totalorder %s120, %s121
      %p135 = scmp.eq.s32.totalorder %s19, 1
      %p136 = por %p134, %p135
      %p138 = scmp.ne.s32.totalorder %s121, %s137
      %p139 = scmp.eq.s32.totalorder %s19, 0
      %p140 = por %p138, %p139
      %p141 = scmp.le.s32.totalorder 1, %s13
      %p142 = scmp.lt.s32.totalorder %s13, 3
      %p143 = pnand %p141, %p142
      %p144 = pneg %p143
      // Predicated region
      $region9: #{tpu_custom_call.1} parent=5 // pred_check
        _
      $region10: #{tpu_custom_call.1} parent=5 // pred_check_branch
        %146 = sbr.rel (%p143) target = $region12
      $region11: #{tpu_custom_call.1} parent=5 // pred_region
        %s147 = ssub.s32 %s13, 1
        // Predicated region
        $region13: #{tpu_custom_call.1} parent=11 // pred_check
          %p148 = pneg %p60
        $region14: #{tpu_custom_call.1} parent=11 // pred_check_branch
          %150 = sbr.rel (%p148) target = $region16
        $region15: #{tpu_custom_call.1} parent=11 // pred_region
          _
        $region16: #{tpu_custom_call.1} parent=11 // pred_fallthru
          _
        // Predicated region
        $region17: #{tpu_custom_call.1} parent=11 // pred_check
          %p151 = pneg %p107
        $region18: #{tpu_custom_call.1} parent=11 // pred_check_branch
          %153 = sbr.rel (%p151) target = $region20
        $region19: #{tpu_custom_call.1} parent=11 // pred_region
          _
        $region20: #{tpu_custom_call.1} parent=11 // pred_fallthru
          _
      $region12: #{tpu_custom_call.1} parent=5 // pred_fallthru
        _
      %p154 = scmp.lt.s32.totalorder %s13, 2
      // Predicated region
      $region21: #{tpu_custom_call.1} parent=5 // pred_check
        %p155 = pneg %p154
      $region22: #{tpu_custom_call.1} parent=5 // pred_check_branch
        %157 = sbr.rel (%p155) target = $region24
      $region23: #{tpu_custom_call.1} parent=5 // pred_region
        // Predicated region
        $region25: #{tpu_custom_call.1} parent=23 // pred_check
          %p158 = pneg %p33
        $region26: #{tpu_custom_call.1} parent=23 // pred_check_branch
          %160 = sbr.rel (%p158) target = $region28
        $region27: #{tpu_custom_call.1} parent=23 // pred_region
          %s161 = smul.u32 16, %s13
          %p162 = scmp.lt.s32.totalorder %s161, 31
          %s163 = scalar_select %p162, %s161, 31
          %s164 = smul.addr %s163, 8
          %s165 = scalar_lea.vmem %s0, %s164
          %s166 = smul.u32 16, %s13
        $region28: #{tpu_custom_call.1} parent=23 // pred_fallthru
          _
        // Predicated region
        $region29: #{tpu_custom_call.1} parent=23 // pred_check
          %p167 = pneg %p80
        $region30: #{tpu_custom_call.1} parent=23 // pred_check_branch
          %169 = sbr.rel (%p167) target = $region32
        $region31: #{tpu_custom_call.1} parent=23 // pred_region
          %s170 = smul.u32 16, %s13
          %p171 = scmp.lt.s32.totalorder %s170, 31
          %s172 = scalar_select %p171, %s170, 31
          %s173 = smul.addr %s172, 4
          %s174 = scalar_lea.vmem %s2, %s173
          %s175 = smul.u32 16, %s13
        $region32: #{tpu_custom_call.1} parent=23 // pred_fallthru
          _
      $region24: #{tpu_custom_call.1} parent=5 // pred_fallthru
        _
      %p176 = scmp.le.s32.totalorder 1, %s13
      %p177 = scmp.lt.s32.totalorder %s13, 3
      %p178 = pnand %p176, %p177
      %p179 = pneg %p178
      // Predicated region
      $region33: #{tpu_custom_call.1} parent=5 // pred_check
        _
      $region34: #{tpu_custom_call.1} parent=5 // pred_check_branch
        %181 = sbr.rel (%p178) target = $region36
      $region35: #{tpu_custom_call.1} parent=5 // pred_region
        %s182 = ssub.s32 %s13, 1
        %s183 = smul.u32 16, %s18
        %p184 = scmp.lt.s32.totalorder %s183, 31
        %s185 = scalar_select %p184, %s183, 31
        %s186 = smul.addr %s185, 8
        %s187 = scalar_lea.vmem %s0, %s186
        %p188 = pneg %p39
        %p189 = pneg %p36
        %p190 = pneg %p60
        %p191 = pneg %p57
        %s192 = smul.u32 16, %s18
        %p193 = scmp.lt.s32.totalorder %s192, 31
        %s194 = scalar_select %p193, %s192, 31
        %s195 = smul.addr %s194, 4
        %s196 = scalar_lea.vmem %s2, %s195
        %p197 = pneg %p86
        %p198 = pneg %p83
        %p199 = pneg %p107
        %p200 = pneg %p104
        %p201 = pneg %p133
        %p202 = pneg %p130
        %s203 = sand.u32 %s120, 1
        %s204 = scalar_lea.sflag [#allocation3], %s203
        %s205 = sand.u32 %s120, 1
        %s206 = smul.addr %s205, 8
        %s207 = scalar_lea.vmem [#allocation2], %s206
        %s208 = smul.u32 16, %s18
        %p209 = scmp.lt.s32.totalorder %s208, 31
        %s210 = scalar_select %p209, %s208, 31
        %s211 = smul.addr %s210, 8
        %s212 = scalar_lea.vmem %s0, %s211
        %s213 = smul.u32 16, %s18
        %s214 = smul.u32 16, %s18
        %p215 = scmp.lt.s32.totalorder %s214, 31
        %s216 = scalar_select %p215, %s214, 31
        %s217 = smul.addr %s216, 4
        %s218 = scalar_lea.vmem %s2, %s217
        %s219 = smul.u32 16, %s18
        %s221 = smul.u32 %s18, 128
        %v222 = vld [vmem:[%s218] sm:$0xf]
        %v223 = vld [vmem:[%s218 + $0x4] sm:$0xf]
        %v224 = vld [vmem:[%s218 + $0x8] sm:$0xf]
        %v225 = vld [vmem:[%s218 + $0xc] sm:$0xf]
        %v226 = vld [vmem:[%s218 + $0x10] sm:$0xf]
        %v227 = vld [vmem:[%s218 + $0x14] sm:$0xf]
        %v228 = vld [vmem:[%s218 + $0x18] sm:$0xf]
        %v229 = vld [vmem:[%s218 + $0x1c] sm:$0xf]
        %v230 = vld [vmem:[%s218 + $0x20] sm:$0xf]
        %v231 = vld [vmem:[%s218 + $0x24] sm:$0xf]
        %v232 = vld [vmem:[%s218 + $0x28] sm:$0xf]
        %v233 = vld [vmem:[%s218 + $0x2c] sm:$0xf]
        %v234 = vld [vmem:[%s218 + $0x30] sm:$0xf]
        %v235 = vld [vmem:[%s218 + $0x34] sm:$0xf]
        %v236 = vld [vmem:[%s218 + $0x38] sm:$0xf]
        %v237 = vld [vmem:[%s218 + $0x3c] sm:$0xf]
        %v238 = vld [vmem:[%s3] sm:$0xff]
        %v239 = vld [vmem:[%s3 + $0x8] sm:$0xff]
        %v240 = vld [vmem:[%s3 + $0x10] sm:$0xff]
        %v241 = vld [vmem:[%s3 + $0x18] sm:$0xff]
        %v242 = vld [vmem:[%s3 + $0x20] sm:$0xff]
        %v243 = vld [vmem:[%s3 + $0x28] sm:$0xff]
        %v244 = vld [vmem:[%s3 + $0x30] sm:$0xff]
        %v245 = vld [vmem:[%s3 + $0x38] sm:$0xff]
        %v246 = vld [vmem:[%s3 + $0x40] sm:$0xff]
        %v247 = vld [vmem:[%s3 + $0x48] sm:$0xff]
        %v248 = vld [vmem:[%s3 + $0x50] sm:$0xff]
        %v249 = vld [vmem:[%s3 + $0x58] sm:$0xff]
        %v250 = vld [vmem:[%s3 + $0x60] sm:$0xff]
        %v251 = vld [vmem:[%s3 + $0x68] sm:$0xff]
        %v252 = vld [vmem:[%s3 + $0x70] sm:$0xff]
        %v253 = vld [vmem:[%s3 + $0x78] sm:$0xff]
        %v270 = vunpack.c.l.b16 %v222
        %v271 = vunpack.c.l.b16 %v223
        %v272 = vunpack.c.l.b16 %v224
        %v273 = vunpack.c.l.b16 %v225
        %v274 = vunpack.c.l.b16 %v226
        %v275 = vunpack.c.l.b16 %v227
        %v276 = vunpack.c.l.b16 %v228
        %v277 = vunpack.c.l.b16 %v229
        %v278 = vunpack.c.l.b16 %v230
        %v279 = vunpack.c.l.b16 %v231
        %v280 = vunpack.c.l.b16 %v232
        %v281 = vunpack.c.l.b16 %v233
        %v282 = vunpack.c.l.b16 %v234
        %v283 = vunpack.c.l.b16 %v235
        %v284 = vunpack.c.l.b16 %v236
        %v285 = vunpack.c.l.b16 %v237
        %v286 = vpack.c.b16 %v271, %v270
        %v287 = vpack.c.b16 %v273, %v272
        %v288 = vpack.c.b16 %v275, %v274
        %v289 = vpack.c.b16 %v277, %v276
        %v290 = vpack.c.b16 %v279, %v278
        %v291 = vpack.c.b16 %v281, %v280
        %v292 = vpack.c.b16 %v283, %v282
        %v293 = vpack.c.b16 %v285, %v284
        %v318 = vunpack.c.l.b16 %v238
        %v319 = vunpack.c.h.b16 %v238
        %v320 = vunpack.c.l.b16 %v239
        %v321 = vunpack.c.h.b16 %v239
        %v322 = vunpack.c.l.b16 %v240
        %v323 = vunpack.c.h.b16 %v240
        %v324 = vunpack.c.l.b16 %v241
        %v325 = vunpack.c.h.b16 %v241
        %v326 = vunpack.c.l.b16 %v242
        %v327 = vunpack.c.h.b16 %v242
        %v328 = vunpack.c.l.b16 %v243
        %v329 = vunpack.c.h.b16 %v243
        %v330 = vunpack.c.l.b16 %v244
        %v331 = vunpack.c.h.b16 %v244
        %v332 = vunpack.c.l.b16 %v245
        %v333 = vunpack.c.h.b16 %v245
        %v334 = vunpack.c.l.b16 %v246
        %v335 = vunpack.c.h.b16 %v246
        %v336 = vunpack.c.l.b16 %v247
        %v337 = vunpack.c.h.b16 %v247
        %v338 = vunpack.c.l.b16 %v248
        %v339 = vunpack.c.h.b16 %v248
        %v340 = vunpack.c.l.b16 %v249
        %v341 = vunpack.c.h.b16 %v249
        %v342 = vunpack.c.l.b16 %v250
        %v343 = vunpack.c.h.b16 %v250
        %v344 = vunpack.c.l.b16 %v251
        %v345 = vunpack.c.h.b16 %v251
        %v346 = vunpack.c.l.b16 %v252
        %v347 = vunpack.c.h.b16 %v252
        %v348 = vunpack.c.l.b16 %v253
        %v349 = vunpack.c.h.b16 %v253
        %v350 = vpack.c.b16 %v320, %v318
        %v351 = vpack.c.b16 %v321, %v319
        %v352 = vpack.c.b16 %v324, %v322
        %v353 = vpack.c.b16 %v325, %v323
        %v354 = vpack.c.b16 %v328, %v326
        %v355 = vpack.c.b16 %v329, %v327
        %v356 = vpack.c.b16 %v332, %v330
        %v357 = vpack.c.b16 %v333, %v331
        %v358 = vpack.c.b16 %v336, %v334
        %v359 = vpack.c.b16 %v337, %v335
        %v360 = vpack.c.b16 %v340, %v338
        %v361 = vpack.c.b16 %v341, %v339
        %v362 = vpack.c.b16 %v344, %v342
        %v363 = vpack.c.b16 %v345, %v343
        %v364 = vpack.c.b16 %v348, %v346
        %v365 = vpack.c.b16 %v349, %v347
        %382 = vmatprep.subr.bf16.mxu0 %v351
        %383 = vmatpush1.bf16.msra.mxu0 %v350
        %384 = vmatprep.subr.bf16.mxu0 %v353
        %385 = vmatpush1.bf16.msra.mxu0 %v352
        %386 = vmatprep.subr.bf16.mxu0 %v355
        %387 = vmatpush1.bf16.msra.mxu0 %v354
        %388 = vmatprep.subr.bf16.mxu0 %v357
        %389 = vmatpush1.bf16.msra.mxu0 %v356
        %390 = vmatprep.subr.bf16.mxu0 %v359
        %391 = vmatpush1.bf16.msra.mxu0 %v358
        %392 = vmatprep.subr.bf16.mxu0 %v361
        %393 = vmatpush1.bf16.msra.mxu0 %v360
        %394 = vmatprep.subr.bf16.mxu0 %v363
        %395 = vmatpush1.bf16.msra.mxu0 %v362
        %396 = vmatprep.subr.bf16.mxu0 %v365
        %397 = vmatpush1.bf16.msra.mxu0 %v364
        %398 = vmatprep.subr.bf16.mxu0 0
        %399 = vmatpush1.bf16.msra.mxu0 0
        %400 = vmatprep.subr.bf16.mxu0 0
        %401 = vmatpush1.bf16.msra.mxu0 0
        %402 = vmatprep.subr.bf16.mxu0 0
        %403 = vmatpush1.bf16.msra.mxu0 0
        %404 = vmatprep.subr.bf16.mxu0 0
        %405 = vmatpush1.bf16.msra.mxu0 0
        %406 = vmatprep.subr.bf16.mxu0 0
        %407 = vmatpush1.bf16.msra.mxu0 0
        %408 = vmatprep.subr.bf16.mxu0 0
        %409 = vmatpush1.bf16.msra.mxu0 0
        %410 = vmatprep.subr.bf16.mxu0 0
        %411 = vmatpush1.bf16.msra.mxu0 0
        %412 = vmatprep.subr.bf16.mxu0 0
        %413 = vmatpush1.bf16.msra.mxu0 0
        %414 = vmatprep.mubr.bf16.mxu0 0
        %415 = vmatmul.mubr.bf16.gmra.mrb[0].mxu0 %v286
        %v416 = vpop.f32.mrb[0].mxu0
        %v417 = vadd.f32 0.0, %v416
        %v418 = vpop.f32.mrb[0].mxu0
        %v419 = vadd.f32 0.0, %v418
        %v420 = vpop.f32.mrb[0].mxu0
        %v421 = vadd.f32 0.0, %v420
        %v422 = vpop.f32.mrb[0].mxu0
        %v423 = vadd.f32 0.0, %v422
        %424 = vmatprep.mubr.bf16.mxu0 0
        %425 = vmatmul.mubr.bf16.gmra.mrb[0].mxu0 %v287
        %v426 = vpop.f32.mrb[0].mxu0
        %v427 = vadd.f32 0.0, %v426
        %v428 = vpop.f32.mrb[0].mxu0
        %v429 = vadd.f32 0.0, %v428
        %v430 = vpop.f32.mrb[0].mxu0
        %v431 = vadd.f32 0.0, %v430
        %v432 = vpop.f32.mrb[0].mxu0
        %v433 = vadd.f32 0.0, %v432
        %434 = vmatprep.mubr.bf16.mxu0 0
        %435 = vmatmul.mubr.bf16.gmra.mrb[0].mxu0 %v288
        %v436 = vpop.f32.mrb[0].mxu0
        %v437 = vadd.f32 0.0, %v436
        %v438 = vpop.f32.mrb[0].mxu0
        %v439 = vadd.f32 0.0, %v438
        %v440 = vpop.f32.mrb[0].mxu0
        %v441 = vadd.f32 0.0, %v440
        %v442 = vpop.f32.mrb[0].mxu0
        %v443 = vadd.f32 0.0, %v442
        %444 = vmatprep.mubr.bf16.mxu0 0
        %445 = vmatmul.mubr.bf16.gmra.mrb[0].mxu0 %v289
        %v446 = vpop.f32.mrb[0].mxu0
        %v447 = vadd.f32 0.0, %v446
        %v448 = vpop.f32.mrb[0].mxu0
        %v449 = vadd.f32 0.0, %v448
        %v450 = vpop.f32.mrb[0].mxu0
        %v451 = vadd.f32 0.0, %v450
        %v452 = vpop.f32.mrb[0].mxu0
        %v453 = vadd.f32 0.0, %v452
        %454 = vmatprep.mubr.bf16.mxu0 0
        %455 = vmatmul.mubr.bf16.gmra.mrb[0].mxu0 %v290
        %v456 = vpop.f32.mrb[0].mxu0
        %v457 = vadd.f32 0.0, %v456
        %v458 = vpop.f32.mrb[0].mxu0
        %v459 = vadd.f32 0.0, %v458
        %v460 = vpop.f32.mrb[0].mxu0
        %v461 = vadd.f32 0.0, %v460
        %v462 = vpop.f32.mrb[0].mxu0
        %v463 = vadd.f32 0.0, %v462
        %464 = vmatprep.mubr.bf16.mxu0 0
        %465 = vmatmul.mubr.bf16.gmra.mrb[0].mxu0 %v291
        %v466 = vpop.f32.mrb[0].mxu0
        %v467 = vadd.f32 0.0, %v466
        %v468 = vpop.f32.mrb[0].mxu0
        %v469 = vadd.f32 0.0, %v468
        %v470 = vpop.f32.mrb[0].mxu0
        %v471 = vadd.f32 0.0, %v470
        %v472 = vpop.f32.mrb[0].mxu0
        %v473 = vadd.f32 0.0, %v472
        %474 = vmatprep.mubr.bf16.mxu0 0
        %475 = vmatmul.mubr.bf16.gmra.mrb[0].mxu0 %v292
        %v476 = vpop.f32.mrb[0].mxu0
        %v477 = vadd.f32 0.0, %v476
        %v478 = vpop.f32.mrb[0].mxu0
        %v479 = vadd.f32 0.0, %v478
        %v480 = vpop.f32.mrb[0].mxu0
        %v481 = vadd.f32 0.0, %v480
        %v482 = vpop.f32.mrb[0].mxu0
        %v483 = vadd.f32 0.0, %v482
        %484 = vmatprep.mubr.bf16.mxu0 0
        %485 = vmatmul.mubr.bf16.gmra.mrb[0].mxu0 %v293
        %v486 = vpop.f32.mrb[0].mxu0
        %v487 = vadd.f32 0.0, %v486
        %v488 = vpop.f32.mrb[0].mxu0
        %v489 = vadd.f32 0.0, %v488
        %v490 = vpop.f32.mrb[0].mxu0
        %v491 = vadd.f32 0.0, %v490
        %v492 = vpop.f32.mrb[0].mxu0
        %v493 = vadd.f32 0.0, %v492
        %494 = vdwg.mxu0
        %v495 = vmul.f32 %v417, 14.285714
        %v496 = vmul.f32 %v419, 14.285714
        %v497 = vmul.f32 %v421, 14.285714
        %v498 = vmul.f32 %v423, 14.285714
        %v499 = vmul.f32 %v427, 14.285714
        %v500 = vmul.f32 %v429, 14.285714
        %v501 = vmul.f32 %v431, 14.285714
        %v502 = vmul.f32 %v433, 14.285714
        %v503 = vmul.f32 %v437, 14.285714
        %v504 = vmul.f32 %v439, 14.285714
        %v505 = vmul.f32 %v441, 14.285714
        %v506 = vmul.f32 %v443, 14.285714
        %v507 = vmul.f32 %v447, 14.285714
        %v508 = vmul.f32 %v449, 14.285714
        %v509 = vmul.f32 %v451, 14.285714
        %v510 = vmul.f32 %v453, 14.285714
        %v511 = vmul.f32 %v457, 14.285714
        %v512 = vmul.f32 %v459, 14.285714
        %v513 = vmul.f32 %v461, 14.285714
        %v514 = vmul.f32 %v463, 14.285714
        %v515 = vmul.f32 %v467, 14.285714
        %v516 = vmul.f32 %v469, 14.285714
        %v517 = vmul.f32 %v471, 14.285714
        %v518 = vmul.f32 %v473, 14.285714
        %v519 = vmul.f32 %v477, 14.285714
        %v520 = vmul.f32 %v479, 14.285714
        %v521 = vmul.f32 %v481, 14.285714
        %v522 = vmul.f32 %v483, 14.285714
        %v523 = vmul.f32 %v487, 14.285714
        %v524 = vmul.f32 %v489, 14.285714
        %v525 = vmul.f32 %v491, 14.285714
        %v526 = vmul.f32 %v493, 14.285714
        %v527 = vmax.f32 %v495, %v496
        %528 = vmax.xlane.f32.xlu0 %v527
        %v529 = vpop.xlane.xlu0 %528
        %v530 = vmax.f32 %v497, %v498
        %531 = vmax.xlane.f32.xlu0 %v530
        %v532 = vpop.xlane.xlu0 %531
        %v533 = vmax.f32 %v499, %v500
        %534 = vmax.xlane.f32.xlu0 %v533
        %v535 = vpop.xlane.xlu0 %534
        %v536 = vmax.f32 %v501, %v502
        %537 = vmax.xlane.f32.xlu0 %v536
        %v538 = vpop.xlane.xlu0 %537
        %v539 = vmax.f32 %v503, %v504
        %540 = vmax.xlane.f32.xlu0 %v539
        %v541 = vpop.xlane.xlu0 %540
        %v542 = vmax.f32 %v505, %v506
        %543 = vmax.xlane.f32.xlu0 %v542
        %v544 = vpop.xlane.xlu0 %543
        %v545 = vmax.f32 %v507, %v508
        %546 = vmax.xlane.f32.xlu0 %v545
        %v547 = vpop.xlane.xlu0 %546
        %v548 = vmax.f32 %v509, %v510
        %549 = vmax.xlane.f32.xlu0 %v548
        %v550 = vpop.xlane.xlu0 %549
        %v551 = vmax.f32 %v511, %v512
        %552 = vmax.xlane.f32.xlu0 %v551
        %v553 = vpop.xlane.xlu0 %552
        %v554 = vmax.f32 %v513, %v514
        %555 = vmax.xlane.f32.xlu0 %v554
        %v556 = vpop.xlane.xlu0 %555
        %v557 = vmax.f32 %v515, %v516
        %558 = vmax.xlane.f32.xlu0 %v557
        %v559 = vpop.xlane.xlu0 %558
        %v560 = vmax.f32 %v517, %v518
        %561 = vmax.xlane.f32.xlu0 %v560
        %v562 = vpop.xlane.xlu0 %561
        %v563 = vmax.f32 %v519, %v520
        %564 = vmax.xlane.f32.xlu0 %v563
        %v565 = vpop.xlane.xlu0 %564
        %v566 = vmax.f32 %v521, %v522
        %567 = vmax.xlane.f32.xlu0 %v566
        %v568 = vpop.xlane.xlu0 %567
        %v569 = vmax.f32 %v523, %v524
        %570 = vmax.xlane.f32.xlu0 %v569
        %v571 = vpop.xlane.xlu0 %570
        %v572 = vmax.f32 %v525, %v526
        %573 = vmax.xlane.f32.xlu0 %v572
        %v574 = vpop.xlane.xlu0 %573
        %v575 = vsub.f32 %v495, %v529
        %v576 = vsub.f32 %v496, %v529
        %v577 = vsub.f32 %v497, %v532
        %v578 = vsub.f32 %v498, %v532
        %v579 = vsub.f32 %v499, %v535
        %v580 = vsub.f32 %v500, %v535
        %v581 = vsub.f32 %v501, %v538
        %v582 = vsub.f32 %v502, %v538
        %v583 = vsub.f32 %v503, %v541
        %v584 = vsub.f32 %v504, %v541
        %v585 = vsub.f32 %v505, %v544
        %v586 = vsub.f32 %v506, %v544
        %v587 = vsub.f32 %v507, %v547
        %v588 = vsub.f32 %v508, %v547
        %v589 = vsub.f32 %v509, %v550
        %v590 = vsub.f32 %v510, %v550
        %v591 = vsub.f32 %v511, %v553
        %v592 = vsub.f32 %v512, %v553
        %v593 = vsub.f32 %v513, %v556
        %v594 = vsub.f32 %v514, %v556
        %v595 = vsub.f32 %v515, %v559
        %v596 = vsub.f32 %v516, %v559
        %v597 = vsub.f32 %v517, %v562
        %v598 = vsub.f32 %v518, %v562
        %v599 = vsub.f32 %v519, %v565
        %v600 = vsub.f32 %v520, %v565
        %v601 = vsub.f32 %v521, %v568
        %v602 = vsub.f32 %v522, %v568
        %v603 = vsub.f32 %v523, %v571
        %v604 = vsub.f32 %v524, %v571
        %v605 = vsub.f32 %v525, %v574
        %v606 = vsub.f32 %v526, %v574
        %v607 = vmul.f32 %v575, 1.442695
        %v608 = vpow.pop %v607
        %v609 = vmul.f32 %v576, 1.442695
        %v610 = vpow.pop %v609
        %v611 = vmul.f32 %v577, 1.442695
        %v612 = vpow.pop %v611
        %v613 = vmul.f32 %v578, 1.442695
        %v614 = vpow.pop %v613
        %v615 = vmul.f32 %v579, 1.442695
        %v616 = vpow.pop %v615
        %v617 = vmul.f32 %v580, 1.442695
        %v618 = vpow.pop %v617
        %v619 = vmul.f32 %v581, 1.442695
        %v620 = vpow.pop %v619
        %v621 = vmul.f32 %v582, 1.442695
        %v622 = vpow.pop %v621
        %v623 = vmul.f32 %v583, 1.442695
        %v624 = vpow.pop %v623
        %v625 = vmul.f32 %v584, 1.442695
        %v626 = vpow.pop %v625
        %v627 = vmul.f32 %v585, 1.442695
        %v628 = vpow.pop %v627
        %v629 = vmul.f32 %v586, 1.442695
        %v630 = vpow.pop %v629
        %v631 = vmul.f32 %v587, 1.442695
        %v632 = vpow.pop %v631
        %v633 = vmul.f32 %v588, 1.442695
        %v634 = vpow.pop %v633
        %v635 = vmul.f32 %v589, 1.442695
        %v636 = vpow.pop %v635
        %v637 = vmul.f32 %v590, 1.442695
        %v638 = vpow.pop %v637
        %v639 = vmul.f32 %v591, 1.442695
        %v640 = vpow.pop %v639
        %v641 = vmul.f32 %v592, 1.442695
        %v642 = vpow.pop %v641
        %v643 = vmul.f32 %v593, 1.442695
        %v644 = vpow.pop %v643
        %v645 = vmul.f32 %v594, 1.442695
        %v646 = vpow.pop %v645
        %v647 = vmul.f32 %v595, 1.442695
        %v648 = vpow.pop %v647
        %v649 = vmul.f32 %v596, 1.442695
        %v650 = vpow.pop %v649
        %v651 = vmul.f32 %v597, 1.442695
        %v652 = vpow.pop %v651
        %v653 = vmul.f32 %v598, 1.442695
        %v654 = vpow.pop %v653
        %v655 = vmul.f32 %v599, 1.442695
        %v656 = vpow.pop %v655
        %v657 = vmul.f32 %v600, 1.442695
        %v658 = vpow.pop %v657
        %v659 = vmul.f32 %v601, 1.442695
        %v660 = vpow.pop %v659
        %v661 = vmul.f32 %v602, 1.442695
        %v662 = vpow.pop %v661
        %v663 = vmul.f32 %v603, 1.442695
        %v664 = vpow.pop %v663
        %v665 = vmul.f32 %v604, 1.442695
        %v666 = vpow.pop %v665
        %v667 = vmul.f32 %v605, 1.442695
        %v668 = vpow.pop %v667
        %v669 = vmul.f32 %v606, 1.442695
        %v670 = vpow.pop %v669
        %v671 = vlaneseq
        %v672 = vand.u32 %v671, 127
        %v673 = vadd.s32 %v672, 128
        %v674 = vlaneseq
        %v675 = vshrl.u32 %v674, 7
        %v676 = vadd.s32 %v675, 8
        %v677 = vadd.s32 %v675, 16
        %v678 = vadd.s32 %v675, 24
        %v679 = vadd.s32 %v675, 32
        %v680 = vadd.s32 %v675, 40
        %v681 = vadd.s32 %v675, 48
        %v682 = vadd.s32 %v675, 56
        %v683 = vadd.s32 %v675, 64
        %v684 = vadd.s32 %v675, 72
        %v685 = vadd.s32 %v675, 80
        %v686 = vadd.s32 %v675, 88
        %v687 = vadd.s32 %v675, 96
        %v688 = vadd.s32 %v675, 104
        %v689 = vadd.s32 %v675, 112
        %v690 = vadd.s32 %v675, 120
        %v691 = vstv %s221
        %v692 = vadd.s32 %v675, %v691
        %v693 = vadd.s32 %v676, %v691
        %v694 = vadd.s32 %v677, %v691
        %v695 = vadd.s32 %v678, %v691
        %v696 = vadd.s32 %v679, %v691
        %v697 = vadd.s32 %v680, %v691
        %v698 = vadd.s32 %v681, %v691
        %v699 = vadd.s32 %v682, %v691
        %v700 = vadd.s32 %v683, %v691
        %v701 = vadd.s32 %v684, %v691
        %v702 = vadd.s32 %v685, %v691
        %v703 = vadd.s32 %v686, %v691
        %v704 = vadd.s32 %v687, %v691
        %v705 = vadd.s32 %v688, %v691
        %v706 = vadd.s32 %v689, %v691
        %v707 = vadd.s32 %v690, %v691
        %vm708 = vcmp.eq.s32.totalorder %v672, %v692
        %vm709 = vcmp.eq.s32.totalorder %v673, %v692
        %vm710 = vcmp.eq.s32.totalorder %v672, %v693
        %vm711 = vcmp.eq.s32.totalorder %v673, %v693
        %vm712 = vcmp.eq.s32.totalorder %v672, %v694
        %vm713 = vcmp.eq.s32.totalorder %v673, %v694
        %vm714 = vcmp.eq.s32.totalorder %v672, %v695
        %vm715 = vcmp.eq.s32.totalorder %v673, %v695
        %vm716 = vcmp.eq.s32.totalorder %v672, %v696
        %vm717 = vcmp.eq.s32.totalorder %v673, %v696
        %vm718 = vcmp.eq.s32.totalorder %v672, %v697
        %vm719 = vcmp.eq.s32.totalorder %v673, %v697
        %vm720 = vcmp.eq.s32.totalorder %v672, %v698
        %vm721 = vcmp.eq.s32.totalorder %v673, %v698
        %vm722 = vcmp.eq.s32.totalorder %v672, %v699
        %vm723 = vcmp.eq.s32.totalorder %v673, %v699
        %vm724 = vcmp.eq.s32.totalorder %v672, %v700
        %vm725 = vcmp.eq.s32.totalorder %v673, %v700
        %vm726 = vcmp.eq.s32.totalorder %v672, %v701
        %vm727 = vcmp.eq.s32.totalorder %v673, %v701
        %vm728 = vcmp.eq.s32.totalorder %v672, %v702
        %vm729 = vcmp.eq.s32.totalorder %v673, %v702
        %vm730 = vcmp.eq.s32.totalorder %v672, %v703
        %vm731 = vcmp.eq.s32.totalorder %v673, %v703
        %vm732 = vcmp.eq.s32.totalorder %v672, %v704
        %vm733 = vcmp.eq.s32.totalorder %v673, %v704
        %vm734 = vcmp.eq.s32.totalorder %v672, %v705
        %vm735 = vcmp.eq.s32.totalorder %v673, %v705
        %vm736 = vcmp.eq.s32.totalorder %v672, %v706
        %vm737 = vcmp.eq.s32.totalorder %v673, %v706
        %vm738 = vcmp.eq.s32.totalorder %v672, %v707
        %vm739 = vcmp.eq.s32.totalorder %v673, %v707
        %vm740 = vcmp.lt.s32.totalorder %v672, 16
        %vm741 = vcmp.lt.s32.totalorder %v673, 16
        %vm742 = vmxor %vm708, 1
        %vm743 = vmxor %vm709, 1
        %vm744 = vmxor %vm710, 1
        %vm745 = vmxor %vm711, 1
        %vm746 = vmxor %vm712, 1
        %vm747 = vmxor %vm713, 1
        %vm748 = vmxor %vm714, 1
        %vm749 = vmxor %vm715, 1
        %vm750 = vmxor %vm716, 1
        %vm751 = vmxor %vm717, 1
        %vm752 = vmxor %vm718, 1
        %vm753 = vmxor %vm719, 1
        %vm754 = vmxor %vm720, 1
        %vm755 = vmxor %vm721, 1
        %vm756 = vmxor %vm722, 1
        %vm757 = vmxor %vm723, 1
        %vm758 = vmxor %vm724, 1
        %vm759 = vmxor %vm725, 1
        %vm760 = vmxor %vm726, 1
        %vm761 = vmxor %vm727, 1
        %vm762 = vmxor %vm728, 1
        %vm763 = vmxor %vm729, 1
        %vm764 = vmxor %vm730, 1
        %vm765 = vmxor %vm731, 1
        %vm766 = vmxor %vm732, 1
        %vm767 = vmxor %vm733, 1
        %vm768 = vmxor %vm734, 1
        %vm769 = vmxor %vm735, 1
        %vm770 = vmxor %vm736, 1
        %vm771 = vmxor %vm737, 1
        %vm772 = vmxor %vm738, 1
        %vm773 = vmxor %vm739, 1
        %vm774 = vmand %vm740, %vm742
        %vm775 = vmand %vm741, %vm743
        %vm776 = vmand %vm740, %vm744
        %vm777 = vmand %vm741, %vm745
        %vm778 = vmand %vm740, %vm746
        %vm779 = vmand %vm741, %vm747
        %vm780 = vmand %vm740, %vm748
        %vm781 = vmand %vm741, %vm749
        %vm782 = vmand %vm740, %vm750
        %vm783 = vmand %vm741, %vm751
        %vm784 = vmand %vm740, %vm752
        %vm785 = vmand %vm741, %vm753
        %vm786 = vmand %vm740, %vm754
        %vm787 = vmand %vm741, %vm755
        %vm788 = vmand %vm740, %vm756
        %vm789 = vmand %vm741, %vm757
        %vm790 = vmand %vm740, %vm758
        %vm791 = vmand %vm741, %vm759
        %vm792 = vmand %vm740, %vm760
        %vm793 = vmand %vm741, %vm761
        %vm794 = vmand %vm740, %vm762
        %vm795 = vmand %vm741, %vm763
        %vm796 = vmand %vm740, %vm764
        %vm797 = vmand %vm741, %vm765
        %vm798 = vmand %vm740, %vm766
        %vm799 = vmand %vm741, %vm767
        %vm800 = vmand %vm740, %vm768
        %vm801 = vmand %vm741, %vm769
        %vm802 = vmand %vm740, %vm770
        %vm803 = vmand %vm741, %vm771
        %vm804 = vmand %vm740, %vm772
        %vm805 = vmand %vm741, %vm773
        %v806 = vld [vmem:[%s212] sm:$0xff]
        %v807 = vld [vmem:[%s212 + $0x8] sm:$0xff]
        %v808 = vld [vmem:[%s212 + $0x10] sm:$0xff]
        %v809 = vld [vmem:[%s212 + $0x18] sm:$0xff]
        %v810 = vld [vmem:[%s212 + $0x20] sm:$0xff]
        %v811 = vld [vmem:[%s212 + $0x28] sm:$0xff]
        %v812 = vld [vmem:[%s212 + $0x30] sm:$0xff]
        %v813 = vld [vmem:[%s212 + $0x38] sm:$0xff]
        %v814 = vld [vmem:[%s212 + $0x40] sm:$0xff]
        %v815 = vld [vmem:[%s212 + $0x48] sm:$0xff]
        %v816 = vld [vmem:[%s212 + $0x50] sm:$0xff]
        %v817 = vld [vmem:[%s212 + $0x58] sm:$0xff]
        %v818 = vld [vmem:[%s212 + $0x60] sm:$0xff]
        %v819 = vld [vmem:[%s212 + $0x68] sm:$0xff]
        %v820 = vld [vmem:[%s212 + $0x70] sm:$0xff]
        %v821 = vld [vmem:[%s212 + $0x78] sm:$0xff]
        %v822 = vld [vmem:[%s1] sm:$0x3]
        %823 = vset.pattern.permute.xlu0 0
        %824 = vperm.xlu0 %823, %v806
        %v825 = vpop.permute.xlu0 %824
        %826 = vset.pattern.permute.xlu0 0
        %827 = vperm.xlu0 %826, %v807
        %v828 = vpop.permute.xlu0 %827
        %829 = vset.pattern.permute.xlu0 0
        %830 = vperm.xlu0 %829, %v808
        %v831 = vpop.permute.xlu0 %830
        %832 = vset.pattern.permute.xlu0 0
        %833 = vperm.xlu0 %832, %v809
        %v834 = vpop.permute.xlu0 %833
        %835 = vset.pattern.permute.xlu0 0
        %836 = vperm.xlu0 %835, %v810
        %v837 = vpop.permute.xlu0 %836
        %838 = vset.pattern.permute.xlu0 0
        %839 = vperm.xlu0 %838, %v811
        %v840 = vpop.permute.xlu0 %839
        %841 = vset.pattern.permute.xlu0 0
        %842 = vperm.xlu0 %841, %v812
        %v843 = vpop.permute.xlu0 %842
        %844 = vset.pattern.permute.xlu0 0
        %845 = vperm.xlu0 %844, %v813
        %v846 = vpop.permute.xlu0 %845
        %847 = vset.pattern.permute.xlu0 0
        %848 = vperm.xlu0 %847, %v814
        %v849 = vpop.permute.xlu0 %848
        %850 = vset.pattern.permute.xlu0 0
        %851 = vperm.xlu0 %850, %v815
        %v852 = vpop.permute.xlu0 %851
        %853 = vset.pattern.permute.xlu0 0
        %854 = vperm.xlu0 %853, %v816
        %v855 = vpop.permute.xlu0 %854
        %856 = vset.pattern.permute.xlu0 0
        %857 = vperm.xlu0 %856, %v817
        %v858 = vpop.permute.xlu0 %857
        %859 = vset.pattern.permute.xlu0 0
        %860 = vperm.xlu0 %859, %v818
        %v861 = vpop.permute.xlu0 %860
        %862 = vset.pattern.permute.xlu0 0
        %863 = vperm.xlu0 %862, %v819
        %v864 = vpop.permute.xlu0 %863
        %865 = vset.pattern.permute.xlu0 0
        %866 = vperm.xlu0 %865, %v820
        %v867 = vpop.permute.xlu0 %866
        %868 = vset.pattern.permute.xlu0 0
        %869 = vperm.xlu0 %868, %v821
        %v870 = vpop.permute.xlu0 %869
        %v871 = vlaneseq
        %v872 = vshrl.u32 %v871, 7
        %v873 = vsub.s32 0, %v872
        %v874 = vrot.slane %v822, %v873
        %v875 = vlaneseq
        %v876 = vshrl.u32 %v875, 7
        %v877 = vsub.s32 1, %v876
        %v878 = vrot.slane %v822, %v877
        %vm879 = vcmp.eq.s32.totalorder %v825, %v874
        %vm880 = vcmp.eq.s32.totalorder %v825, %v878
        %vm881 = vcmp.eq.s32.totalorder %v828, %v874
        %vm882 = vcmp.eq.s32.totalorder %v828, %v878
        %vm883 = vcmp.eq.s32.totalorder %v831, %v874
        %vm884 = vcmp.eq.s32.totalorder %v831, %v878
        %vm885 = vcmp.eq.s32.totalorder %v834, %v874
        %vm886 = vcmp.eq.s32.totalorder %v834, %v878
        %vm887 = vcmp.eq.s32.totalorder %v837, %v874
        %vm888 = vcmp.eq.s32.totalorder %v837, %v878
        %vm889 = vcmp.eq.s32.totalorder %v840, %v874
        %vm890 = vcmp.eq.s32.totalorder %v840, %v878
        %vm891 = vcmp.eq.s32.totalorder %v843, %v874
        %vm892 = vcmp.eq.s32.totalorder %v843, %v878
        %vm893 = vcmp.eq.s32.totalorder %v846, %v874
        %vm894 = vcmp.eq.s32.totalorder %v846, %v878
        %vm895 = vcmp.eq.s32.totalorder %v849, %v874
        %vm896 = vcmp.eq.s32.totalorder %v849, %v878
        %vm897 = vcmp.eq.s32.totalorder %v852, %v874
        %vm898 = vcmp.eq.s32.totalorder %v852, %v878
        %vm899 = vcmp.eq.s32.totalorder %v855, %v874
        %vm900 = vcmp.eq.s32.totalorder %v855, %v878
        %vm901 = vcmp.eq.s32.totalorder %v858, %v874
        %vm902 = vcmp.eq.s32.totalorder %v858, %v878
        %vm903 = vcmp.eq.s32.totalorder %v861, %v874
        %vm904 = vcmp.eq.s32.totalorder %v861, %v878
        %vm905 = vcmp.eq.s32.totalorder %v864, %v874
        %vm906 = vcmp.eq.s32.totalorder %v864, %v878
        %vm907 = vcmp.eq.s32.totalorder %v867, %v874
        %vm908 = vcmp.eq.s32.totalorder %v867, %v878
        %vm909 = vcmp.eq.s32.totalorder %v870, %v874
        %vm910 = vcmp.eq.s32.totalorder %v870, %v878
        %vm911 = vmand %vm879, %vm774
        %vm912 = vmand %vm880, %vm775
        %vm913 = vmand %vm881, %vm776
        %vm914 = vmand %vm882, %vm777
        %vm915 = vmand %vm883, %vm778
        %vm916 = vmand %vm884, %vm779
        %vm917 = vmand %vm885, %vm780
        %vm918 = vmand %vm886, %vm781
        %vm919 = vmand %vm887, %vm782
        %vm920 = vmand %vm888, %vm783
        %vm921 = vmand %vm889, %vm784
        %vm922 = vmand %vm890, %vm785
        %vm923 = vmand %vm891, %vm786
        %vm924 = vmand %vm892, %vm787
        %vm925 = vmand %vm893, %vm788
        %vm926 = vmand %vm894, %vm789
        %vm927 = vmand %vm895, %vm790
        %vm928 = vmand %vm896, %vm791
        %vm929 = vmand %vm897, %vm792
        %vm930 = vmand %vm898, %vm793
        %vm931 = vmand %vm899, %vm794
        %vm932 = vmand %vm900, %vm795
        %vm933 = vmand %vm901, %vm796
        %vm934 = vmand %vm902, %vm797
        %vm935 = vmand %vm903, %vm798
        %vm936 = vmand %vm904, %vm799
        %vm937 = vmand %vm905, %vm800
        %vm938 = vmand %vm906, %vm801
        %vm939 = vmand %vm907, %vm802
        %vm940 = vmand %vm908, %vm803
        %vm941 = vmand %vm909, %vm804
        %vm942 = vmand %vm910, %vm805
        %v943 = vsel %vm774, %v608, 0.0
        %v944 = vsel %vm775, %v610, 0.0
        %v945 = vsel %vm776, %v612, 0.0
        %v946 = vsel %vm777, %v614, 0.0
        %v947 = vsel %vm778, %v616, 0.0
        %v948 = vsel %vm779, %v618, 0.0
        %v949 = vsel %vm780, %v620, 0.0
        %v950 = vsel %vm781, %v622, 0.0
        %v951 = vsel %vm782, %v624, 0.0
        %v952 = vsel %vm783, %v626, 0.0
        %v953 = vsel %vm784, %v628, 0.0
        %v954 = vsel %vm785, %v630, 0.0
        %v955 = vsel %vm786, %v632, 0.0
        %v956 = vsel %vm787, %v634, 0.0
        %v957 = vsel %vm788, %v636, 0.0
        %v958 = vsel %vm789, %v638, 0.0
        %v959 = vsel %vm790, %v640, 0.0
        %v960 = vsel %vm791, %v642, 0.0
        %v961 = vsel %vm792, %v644, 0.0
        %v962 = vsel %vm793, %v646, 0.0
        %v963 = vsel %vm794, %v648, 0.0
        %v964 = vsel %vm795, %v650, 0.0
        %v965 = vsel %vm796, %v652, 0.0
        %v966 = vsel %vm797, %v654, 0.0
        %v967 = vsel %vm798, %v656, 0.0
        %v968 = vsel %vm799, %v658, 0.0
        %v969 = vsel %vm800, %v660, 0.0
        %v970 = vsel %vm801, %v662, 0.0
        %v971 = vsel %vm802, %v664, 0.0
        %v972 = vsel %vm803, %v666, 0.0
        %v973 = vsel %vm804, %v668, 0.0
        %v974 = vsel %vm805, %v670, 0.0
        %v975 = vadd.f32 %v943, %v944
        %976 = vadd.xlane.f32.xlu0 %v975
        %v977 = vpop.xlane.xlu0 %976
        %v978 = vadd.f32 %v945, %v946
        %979 = vadd.xlane.f32.xlu0 %v978
        %v980 = vpop.xlane.xlu0 %979
        %v981 = vadd.f32 %v947, %v948
        %982 = vadd.xlane.f32.xlu0 %v981
        %v983 = vpop.xlane.xlu0 %982
        %v984 = vadd.f32 %v949, %v950
        %985 = vadd.xlane.f32.xlu0 %v984
        %v986 = vpop.xlane.xlu0 %985
        %v987 = vadd.f32 %v951, %v952
        %988 = vadd.xlane.f32.xlu0 %v987
        %v989 = vpop.xlane.xlu0 %988
        %v990 = vadd.f32 %v953, %v954
        %991 = vadd.xlane.f32.xlu0 %v990
        %v992 = vpop.xlane.xlu0 %991
        %v993 = vadd.f32 %v955, %v956
        %994 = vadd.xlane.f32.xlu0 %v993
        %v995 = vpop.xlane.xlu0 %994
        %v996 = vadd.f32 %v957, %v958
        %997 = vadd.xlane.f32.xlu0 %v996
        %v998 = vpop.xlane.xlu0 %997
        %v999 = vadd.f32 %v959, %v960
        %1000 = vadd.xlane.f32.xlu0 %v999
        %v1001 = vpop.xlane.xlu0 %1000
        %v1002 = vadd.f32 %v961, %v962
        %1003 = vadd.xlane.f32.xlu0 %v1002
        %v1004 = vpop.xlane.xlu0 %1003
        %v1005 = vadd.f32 %v963, %v964
        %1006 = vadd.xlane.f32.xlu0 %v1005
        %v1007 = vpop.xlane.xlu0 %1006
        %v1008 = vadd.f32 %v965, %v966
        %1009 = vadd.xlane.f32.xlu0 %v1008
        %v1010 = vpop.xlane.xlu0 %1009
        %v1011 = vadd.f32 %v967, %v968
        %1012 = vadd.xlane.f32.xlu0 %v1011
        %v1013 = vpop.xlane.xlu0 %1012
        %v1014 = vadd.f32 %v969, %v970
        %1015 = vadd.xlane.f32.xlu0 %v1014
        %v1016 = vpop.xlane.xlu0 %1015
        %v1017 = vadd.f32 %v971, %v972
        %1018 = vadd.xlane.f32.xlu0 %v1017
        %v1019 = vpop.xlane.xlu0 %1018
        %v1020 = vadd.f32 %v973, %v974
        %1021 = vadd.xlane.f32.xlu0 %v1020
        %v1022 = vpop.xlane.xlu0 %1021
        %v1023 = vlog2.pop %v977
        %v1024 = vmul.f32 %v1023, 0.6931472
        %v1025 = vlog2.pop %v980
        %v1026 = vmul.f32 %v1025, 0.6931472
        %v1027 = vlog2.pop %v983
        %v1028 = vmul.f32 %v1027, 0.6931472
        %v1029 = vlog2.pop %v986
        %v1030 = vmul.f32 %v1029, 0.6931472
        %v1031 = vlog2.pop %v989
        %v1032 = vmul.f32 %v1031, 0.6931472
        %v1033 = vlog2.pop %v992
        %v1034 = vmul.f32 %v1033, 0.6931472
        %v1035 = vlog2.pop %v995
        %v1036 = vmul.f32 %v1035, 0.6931472
        %v1037 = vlog2.pop %v998
        %v1038 = vmul.f32 %v1037, 0.6931472
        %v1039 = vlog2.pop %v1001
        %v1040 = vmul.f32 %v1039, 0.6931472
        %v1041 = vlog2.pop %v1004
        %v1042 = vmul.f32 %v1041, 0.6931472
        %v1043 = vlog2.pop %v1007
        %v1044 = vmul.f32 %v1043, 0.6931472
        %v1045 = vlog2.pop %v1010
        %v1046 = vmul.f32 %v1045, 0.6931472
        %v1047 = vlog2.pop %v1013
        %v1048 = vmul.f32 %v1047, 0.6931472
        %v1049 = vlog2.pop %v1016
        %v1050 = vmul.f32 %v1049, 0.6931472
        %v1051 = vlog2.pop %v1019
        %v1052 = vmul.f32 %v1051, 0.6931472
        %v1053 = vlog2.pop %v1022
        %v1054 = vmul.f32 %v1053, 0.6931472
        %v1055 = vsel %vm911, %v575, 0.0
        %v1056 = vsel %vm912, %v576, 0.0
        %v1057 = vsel %vm913, %v577, 0.0
        %v1058 = vsel %vm914, %v578, 0.0
        %v1059 = vsel %vm915, %v579, 0.0
        %v1060 = vsel %vm916, %v580, 0.0
        %v1061 = vsel %vm917, %v581, 0.0
        %v1062 = vsel %vm918, %v582, 0.0
        %v1063 = vsel %vm919, %v583, 0.0
        %v1064 = vsel %vm920, %v584, 0.0
        %v1065 = vsel %vm921, %v585, 0.0
        %v1066 = vsel %vm922, %v586, 0.0
        %v1067 = vsel %vm923, %v587, 0.0
        %v1068 = vsel %vm924, %v588, 0.0
        %v1069 = vsel %vm925, %v589, 0.0
        %v1070 = vsel %vm926, %v590, 0.0
        %v1071 = vsel %vm927, %v591, 0.0
        %v1072 = vsel %vm928, %v592, 0.0
        %v1073 = vsel %vm929, %v593, 0.0
        %v1074 = vsel %vm930, %v594, 0.0
        %v1075 = vsel %vm931, %v595, 0.0
        %v1076 = vsel %vm932, %v596, 0.0
        %v1077 = vsel %vm933, %v597, 0.0
        %v1078 = vsel %vm934, %v598, 0.0
        %v1079 = vsel %vm935, %v599, 0.0
        %v1080 = vsel %vm936, %v600, 0.0
        %v1081 = vsel %vm937, %v601, 0.0
        %v1082 = vsel %vm938, %v602, 0.0
        %v1083 = vsel %vm939, %v603, 0.0
        %v1084 = vsel %vm940, %v604, 0.0
        %v1085 = vsel %vm941, %v605, 0.0
        %v1086 = vsel %vm942, %v606, 0.0
        %v1087 = vadd.f32 %v1055, %v1056
        %1088 = vadd.xlane.f32.xlu0 %v1087
        %v1089 = vpop.xlane.xlu0 %1088
        %v1090 = vadd.f32 %v1057, %v1058
        %1091 = vadd.xlane.f32.xlu0 %v1090
        %v1092 = vpop.xlane.xlu0 %1091
        %v1093 = vadd.f32 %v1059, %v1060
        %1094 = vadd.xlane.f32.xlu0 %v1093
        %v1095 = vpop.xlane.xlu0 %1094
        %v1096 = vadd.f32 %v1061, %v1062
        %1097 = vadd.xlane.f32.xlu0 %v1096
        %v1098 = vpop.xlane.xlu0 %1097
        %v1099 = vadd.f32 %v1063, %v1064
        %1100 = vadd.xlane.f32.xlu0 %v1099
        %v1101 = vpop.xlane.xlu0 %1100
        %v1102 = vadd.f32 %v1065, %v1066
        %1103 = vadd.xlane.f32.xlu0 %v1102
        %v1104 = vpop.xlane.xlu0 %1103
        %v1105 = vadd.f32 %v1067, %v1068
        %1106 = vadd.xlane.f32.xlu0 %v1105
        %v1107 = vpop.xlane.xlu0 %1106
        %v1108 = vadd.f32 %v1069, %v1070
        %1109 = vadd.xlane.f32.xlu0 %v1108
        %v1110 = vpop.xlane.xlu0 %1109
        %v1111 = vadd.f32 %v1071, %v1072
        %1112 = vadd.xlane.f32.xlu0 %v1111
        %v1113 = vpop.xlane.xlu0 %1112
        %v1114 = vadd.f32 %v1073, %v1074
        %1115 = vadd.xlane.f32.xlu0 %v1114
        %v1116 = vpop.xlane.xlu0 %1115
        %v1117 = vadd.f32 %v1075, %v1076
        %1118 = vadd.xlane.f32.xlu0 %v1117
        %v1119 = vpop.xlane.xlu0 %1118
        %v1120 = vadd.f32 %v1077, %v1078
        %1121 = vadd.xlane.f32.xlu0 %v1120
        %v1122 = vpop.xlane.xlu0 %1121
        %v1123 = vadd.f32 %v1079, %v1080
        %1124 = vadd.xlane.f32.xlu0 %v1123
        %v1125 = vpop.xlane.xlu0 %1124
        %v1126 = vadd.f32 %v1081, %v1082
        %1127 = vadd.xlane.f32.xlu0 %v1126
        %v1128 = vpop.xlane.xlu0 %1127
        %v1129 = vadd.f32 %v1083, %v1084
        %1130 = vadd.xlane.f32.xlu0 %v1129
        %v1131 = vpop.xlane.xlu0 %1130
        %v1132 = vadd.f32 %v1085, %v1086
        %1133 = vadd.xlane.f32.xlu0 %v1132
        %v1134 = vpop.xlane.xlu0 %1133
        %v1135 = vsel %vm911, 1.0, 0.0
        %v1136 = vsel %vm912, 1.0, 0.0
        %v1137 = vsel %vm913, 1.0, 0.0
        %v1138 = vsel %vm914, 1.0, 0.0
        %v1139 = vsel %vm915, 1.0, 0.0
        %v1140 = vsel %vm916, 1.0, 0.0
        %v1141 = vsel %vm917, 1.0, 0.0
        %v1142 = vsel %vm918, 1.0, 0.0
        %v1143 = vsel %vm919, 1.0, 0.0
        %v1144 = vsel %vm920, 1.0, 0.0
        %v1145 = vsel %vm921, 1.0, 0.0
        %v1146 = vsel %vm922, 1.0, 0.0
        %v1147 = vsel %vm923, 1.0, 0.0
        %v1148 = vsel %vm924, 1.0, 0.0
        %v1149 = vsel %vm925, 1.0, 0.0
        %v1150 = vsel %vm926, 1.0, 0.0
        %v1151 = vsel %vm927, 1.0, 0.0
        %v1152 = vsel %vm928, 1.0, 0.0
        %v1153 = vsel %vm929, 1.0, 0.0
        %v1154 = vsel %vm930, 1.0, 0.0
        %v1155 = vsel %vm931, 1.0, 0.0
        %v1156 = vsel %vm932, 1.0, 0.0
        %v1157 = vsel %vm933, 1.0, 0.0
        %v1158 = vsel %vm934, 1.0, 0.0
        %v1159 = vsel %vm935, 1.0, 0.0
        %v1160 = vsel %vm936, 1.0, 0.0
        %v1161 = vsel %vm937, 1.0, 0.0
        %v1162 = vsel %vm938, 1.0, 0.0
        %v1163 = vsel %vm939, 1.0, 0.0
        %v1164 = vsel %vm940, 1.0, 0.0
        %v1165 = vsel %vm941, 1.0, 0.0
        %v1166 = vsel %vm942, 1.0, 0.0
        %v1167 = vadd.f32 %v1135, %v1136
        %1168 = vadd.xlane.f32.xlu0 %v1167
        %v1169 = vpop.xlane.xlu0 %1168
        %v1170 = vadd.f32 %v1137, %v1138
        %1171 = vadd.xlane.f32.xlu0 %v1170
        %v1172 = vpop.xlane.xlu0 %1171
        %v1173 = vadd.f32 %v1139, %v1140
        %1174 = vadd.xlane.f32.xlu0 %v1173
        %v1175 = vpop.xlane.xlu0 %1174
        %v1176 = vadd.f32 %v1141, %v1142
        %1177 = vadd.xlane.f32.xlu0 %v1176
        %v1178 = vpop.xlane.xlu0 %1177
        %v1179 = vadd.f32 %v1143, %v1144
        %1180 = vadd.xlane.f32.xlu0 %v1179
        %v1181 = vpop.xlane.xlu0 %1180
        %v1182 = vadd.f32 %v1145, %v1146
        %1183 = vadd.xlane.f32.xlu0 %v1182
        %v1184 = vpop.xlane.xlu0 %1183
        %v1185 = vadd.f32 %v1147, %v1148
        %1186 = vadd.xlane.f32.xlu0 %v1185
        %v1187 = vpop.xlane.xlu0 %1186
        %v1188 = vadd.f32 %v1149, %v1150
        %1189 = vadd.xlane.f32.xlu0 %v1188
        %v1190 = vpop.xlane.xlu0 %1189
        %v1191 = vadd.f32 %v1151, %v1152
        %1192 = vadd.xlane.f32.xlu0 %v1191
        %v1193 = vpop.xlane.xlu0 %1192
        %v1194 = vadd.f32 %v1153, %v1154
        %1195 = vadd.xlane.f32.xlu0 %v1194
        %v1196 = vpop.xlane.xlu0 %1195
        %v1197 = vadd.f32 %v1155, %v1156
        %1198 = vadd.xlane.f32.xlu0 %v1197
        %v1199 = vpop.xlane.xlu0 %1198
        %v1200 = vadd.f32 %v1157, %v1158
        %1201 = vadd.xlane.f32.xlu0 %v1200
        %v1202 = vpop.xlane.xlu0 %1201
        %v1203 = vadd.f32 %v1159, %v1160
        %1204 = vadd.xlane.f32.xlu0 %v1203
        %v1205 = vpop.xlane.xlu0 %1204
        %v1206 = vadd.f32 %v1161, %v1162
        %1207 = vadd.xlane.f32.xlu0 %v1206
        %v1208 = vpop.xlane.xlu0 %1207
        %v1209 = vadd.f32 %v1163, %v1164
        %1210 = vadd.xlane.f32.xlu0 %v1209
        %v1211 = vpop.xlane.xlu0 %1210
        %v1212 = vadd.f32 %v1165, %v1166
        %1213 = vadd.xlane.f32.xlu0 %v1212
        %v1214 = vpop.xlane.xlu0 %1213
        %v1215 = vmul.f32 %v1169, %v1024
        %v1216 = vmul.f32 %v1172, %v1026
        %v1217 = vmul.f32 %v1175, %v1028
        %v1218 = vmul.f32 %v1178, %v1030
        %v1219 = vmul.f32 %v1181, %v1032
        %v1220 = vmul.f32 %v1184, %v1034
        %v1221 = vmul.f32 %v1187, %v1036
        %v1222 = vmul.f32 %v1190, %v1038
        %v1223 = vmul.f32 %v1193, %v1040
        %v1224 = vmul.f32 %v1196, %v1042
        %v1225 = vmul.f32 %v1199, %v1044
        %v1226 = vmul.f32 %v1202, %v1046
        %v1227 = vmul.f32 %v1205, %v1048
        %v1228 = vmul.f32 %v1208, %v1050
        %v1229 = vmul.f32 %v1211, %v1052
        %v1230 = vmul.f32 %v1214, %v1054
        %v1231 = vsub.f32 %v1089, %v1215
        %v1232 = vsub.f32 %v1092, %v1216
        %v1233 = vsub.f32 %v1095, %v1217
        %v1234 = vsub.f32 %v1098, %v1218
        %v1235 = vsub.f32 %v1101, %v1219
        %v1236 = vsub.f32 %v1104, %v1220
        %v1237 = vsub.f32 %v1107, %v1221
        %v1238 = vsub.f32 %v1110, %v1222
        %v1239 = vsub.f32 %v1113, %v1223
        %v1240 = vsub.f32 %v1116, %v1224
        %v1241 = vsub.f32 %v1119, %v1225
        %v1242 = vsub.f32 %v1122, %v1226
        %v1243 = vsub.f32 %v1125, %v1227
        %v1244 = vsub.f32 %v1128, %v1228
        %v1245 = vsub.f32 %v1131, %v1229
        %v1246 = vsub.f32 %v1134, %v1230
        %vm1247 = vcmp.gt.f32.partialorder %v1169, 0.0
        %vm1248 = vcmp.gt.f32.partialorder %v1172, 0.0
        %vm1249 = vcmp.gt.f32.partialorder %v1175, 0.0
        %vm1250 = vcmp.gt.f32.partialorder %v1178, 0.0
        %vm1251 = vcmp.gt.f32.partialorder %v1181, 0.0
        %vm1252 = vcmp.gt.f32.partialorder %v1184, 0.0
        %vm1253 = vcmp.gt.f32.partialorder %v1187, 0.0
        %vm1254 = vcmp.gt.f32.partialorder %v1190, 0.0
        %vm1255 = vcmp.gt.f32.partialorder %v1193, 0.0
        %vm1256 = vcmp.gt.f32.partialorder %v1196, 0.0
        %vm1257 = vcmp.gt.f32.partialorder %v1199, 0.0
        %vm1258 = vcmp.gt.f32.partialorder %v1202, 0.0
        %vm1259 = vcmp.gt.f32.partialorder %v1205, 0.0
        %vm1260 = vcmp.gt.f32.partialorder %v1208, 0.0
        %vm1261 = vcmp.gt.f32.partialorder %v1211, 0.0
        %vm1262 = vcmp.gt.f32.partialorder %v1214, 0.0
        %vm1263 = vcmp.lt.s32.totalorder %v692, 16
        %vm1264 = vcmp.lt.s32.totalorder %v693, 16
        %vm1265 = vcmp.lt.s32.totalorder %v694, 16
        %vm1266 = vcmp.lt.s32.totalorder %v695, 16
        %vm1267 = vcmp.lt.s32.totalorder %v696, 16
        %vm1268 = vcmp.lt.s32.totalorder %v697, 16
        %vm1269 = vcmp.lt.s32.totalorder %v698, 16
        %vm1270 = vcmp.lt.s32.totalorder %v699, 16
        %vm1271 = vcmp.lt.s32.totalorder %v700, 16
        %vm1272 = vcmp.lt.s32.totalorder %v701, 16
        %vm1273 = vcmp.lt.s32.totalorder %v702, 16
        %vm1274 = vcmp.lt.s32.totalorder %v703, 16
        %vm1275 = vcmp.lt.s32.totalorder %v704, 16
        %vm1276 = vcmp.lt.s32.totalorder %v705, 16
        %vm1277 = vcmp.lt.s32.totalorder %v706, 16
        %vm1278 = vcmp.lt.s32.totalorder %v707, 16
        %vm1279 = vmand %vm1247, %vm1263
        %vm1280 = vmand %vm1248, %vm1264
        %vm1281 = vmand %vm1249, %vm1265
        %vm1282 = vmand %vm1250, %vm1266
        %vm1283 = vmand %vm1251, %vm1267
        %vm1284 = vmand %vm1252, %vm1268
        %vm1285 = vmand %vm1253, %vm1269
        %vm1286 = vmand %vm1254, %vm1270
        %vm1287 = vmand %vm1255, %vm1271
        %vm1288 = vmand %vm1256, %vm1272
        %vm1289 = vmand %vm1257, %vm1273
        %vm1290 = vmand %vm1258, %vm1274
        %vm1291 = vmand %vm1259, %vm1275
        %vm1292 = vmand %vm1260, %vm1276
        %vm1293 = vmand %vm1261, %vm1277
        %vm1294 = vmand %vm1262, %vm1278
        %v1295 = vmax.f32 %v1169, 1.0
        %v1296 = vmax.f32 %v1172, 1.0
        %v1297 = vmax.f32 %v1175, 1.0
        %v1298 = vmax.f32 %v1178, 1.0
        %v1299 = vmax.f32 %v1181, 1.0
        %v1300 = vmax.f32 %v1184, 1.0
        %v1301 = vmax.f32 %v1187, 1.0
        %v1302 = vmax.f32 %v1190, 1.0
        %v1303 = vmax.f32 %v1193, 1.0
        %v1304 = vmax.f32 %v1196, 1.0
        %v1305 = vmax.f32 %v1199, 1.0
        %v1306 = vmax.f32 %v1202, 1.0
        %v1307 = vmax.f32 %v1205, 1.0
        %v1308 = vmax.f32 %v1208, 1.0
        %v1309 = vmax.f32 %v1211, 1.0
        %v1310 = vmax.f32 %v1214, 1.0
        %v1311 = vrcp.pop %v1295
        %v1312 = vmul.f32 %v1231, %v1311
        %v1313 = vrcp.pop %v1296
        %v1314 = vmul.f32 %v1232, %v1313
        %v1315 = vrcp.pop %v1297
        %v1316 = vmul.f32 %v1233, %v1315
        %v1317 = vrcp.pop %v1298
        %v1318 = vmul.f32 %v1234, %v1317
        %v1319 = vrcp.pop %v1299
        %v1320 = vmul.f32 %v1235, %v1319
        %v1321 = vrcp.pop %v1300
        %v1322 = vmul.f32 %v1236, %v1321
        %v1323 = vrcp.pop %v1301
        %v1324 = vmul.f32 %v1237, %v1323
        %v1325 = vrcp.pop %v1302
        %v1326 = vmul.f32 %v1238, %v1325
        %v1327 = vrcp.pop %v1303
        %v1328 = vmul.f32 %v1239, %v1327
        %v1329 = vrcp.pop %v1304
        %v1330 = vmul.f32 %v1240, %v1329
        %v1331 = vrcp.pop %v1305
        %v1332 = vmul.f32 %v1241, %v1331
        %v1333 = vrcp.pop %v1306
        %v1334 = vmul.f32 %v1242, %v1333
        %v1335 = vrcp.pop %v1307
        %v1336 = vmul.f32 %v1243, %v1335
        %v1337 = vrcp.pop %v1308
        %v1338 = vmul.f32 %v1244, %v1337
        %v1339 = vrcp.pop %v1309
        %v1340 = vmul.f32 %v1245, %v1339
        %v1341 = vrcp.pop %v1310
        %v1342 = vmul.f32 %v1246, %v1341
        %v1343 = vsel %vm1279, %v1312, 0.0
        %v1344 = vsel %vm1280, %v1314, 0.0
        %v1345 = vsel %vm1281, %v1316, 0.0
        %v1346 = vsel %vm1282, %v1318, 0.0
        %v1347 = vsel %vm1283, %v1320, 0.0
        %v1348 = vsel %vm1284, %v1322, 0.0
        %v1349 = vsel %vm1285, %v1324, 0.0
        %v1350 = vsel %vm1286, %v1326, 0.0
        %v1351 = vsel %vm1287, %v1328, 0.0
        %v1352 = vsel %vm1288, %v1330, 0.0
        %v1353 = vsel %vm1289, %v1332, 0.0
        %v1354 = vsel %vm1290, %v1334, 0.0
        %v1355 = vsel %vm1291, %v1336, 0.0
        %v1356 = vsel %vm1292, %v1338, 0.0
        %v1357 = vsel %vm1293, %v1340, 0.0
        %v1358 = vsel %vm1294, %v1342, 0.0
        %vm1359 = vcmask 7168
        %v1360 = vsel %vm1359, %v1343, 0.0
        %v1361 = vsel %vm1359, %v1344, 0.0
        %v1362 = vadd.f32 %v1360, %v1361
        %v1363 = vsel %vm1359, %v1345, 0.0
        %v1364 = vadd.f32 %v1362, %v1363
        %v1365 = vsel %vm1359, %v1346, 0.0
        %v1366 = vadd.f32 %v1364, %v1365
        %v1367 = vsel %vm1359, %v1347, 0.0
        %v1368 = vadd.f32 %v1366, %v1367
        %v1369 = vsel %vm1359, %v1348, 0.0
        %v1370 = vadd.f32 %v1368, %v1369
        %v1371 = vsel %vm1359, %v1349, 0.0
        %v1372 = vadd.f32 %v1370, %v1371
        %v1373 = vsel %vm1359, %v1350, 0.0
        %v1374 = vadd.f32 %v1372, %v1373
        %v1375 = vsel %vm1359, %v1351, 0.0
        %v1376 = vadd.f32 %v1374, %v1375
        %v1377 = vsel %vm1359, %v1352, 0.0
        %v1378 = vadd.f32 %v1376, %v1377
        %v1379 = vsel %vm1359, %v1353, 0.0
        %v1380 = vadd.f32 %v1378, %v1379
        %v1381 = vsel %vm1359, %v1354, 0.0
        %v1382 = vadd.f32 %v1380, %v1381
        %v1383 = vsel %vm1359, %v1355, 0.0
        %v1384 = vadd.f32 %v1382, %v1383
        %v1385 = vsel %vm1359, %v1356, 0.0
        %v1386 = vadd.f32 %v1384, %v1385
        %v1387 = vsel %vm1359, %v1357, 0.0
        %v1388 = vadd.f32 %v1386, %v1387
        %v1389 = vsel %vm1359, %v1358, 0.0
        %v1390 = vadd.f32 %v1388, %v1389
        %1391 = vadd.xlane.f32.xlu0 %v1390
        %v1392 = vpop.xlane.xlu0 %1391
        %v1393 = vrot.slane %v1392, 4
        %v1394 = vadd.f32 %v1392, %v1393
        %v1395 = vrot.slane %v1394, 2
        %v1396 = vadd.f32 %v1394, %v1395
        %v1397 = vrot.slane %v1396, 1
        %v1398 = vadd.f32 %v1396, %v1397
        %s1399 = vtos %v1398
        %v1400 = vsel %vm1279, 1.0, 0.0
        %v1401 = vsel %vm1280, 1.0, 0.0
        %v1402 = vsel %vm1281, 1.0, 0.0
        %v1403 = vsel %vm1282, 1.0, 0.0
        %v1404 = vsel %vm1283, 1.0, 0.0
        %v1405 = vsel %vm1284, 1.0, 0.0
        %v1406 = vsel %vm1285, 1.0, 0.0
        %v1407 = vsel %vm1286, 1.0, 0.0
        %v1408 = vsel %vm1287, 1.0, 0.0
        %v1409 = vsel %vm1288, 1.0, 0.0
        %v1410 = vsel %vm1289, 1.0, 0.0
        %v1411 = vsel %vm1290, 1.0, 0.0
        %v1412 = vsel %vm1291, 1.0, 0.0
        %v1413 = vsel %vm1292, 1.0, 0.0
        %v1414 = vsel %vm1293, 1.0, 0.0
        %v1415 = vsel %vm1294, 1.0, 0.0
        %v1416 = vsel %vm1359, %v1400, 0.0
        %v1417 = vsel %vm1359, %v1401, 0.0
        %v1418 = vadd.f32 %v1416, %v1417
        %v1419 = vsel %vm1359, %v1402, 0.0
        %v1420 = vadd.f32 %v1418, %v1419
        %v1421 = vsel %vm1359, %v1403, 0.0
        %v1422 = vadd.f32 %v1420, %v1421
        %v1423 = vsel %vm1359, %v1404, 0.0
        %v1424 = vadd.f32 %v1422, %v1423
        %v1425 = vsel %vm1359, %v1405, 0.0
        %v1426 = vadd.f32 %v1424, %v1425
        %v1427 = vsel %vm1359, %v1406, 0.0
        %v1428 = vadd.f32 %v1426, %v1427
        %v1429 = vsel %vm1359, %v1407, 0.0
        %v1430 = vadd.f32 %v1428, %v1429
        %v1431 = vsel %vm1359, %v1408, 0.0
        %v1432 = vadd.f32 %v1430, %v1431
        %v1433 = vsel %vm1359, %v1409, 0.0
        %v1434 = vadd.f32 %v1432, %v1433
        %v1435 = vsel %vm1359, %v1410, 0.0
        %v1436 = vadd.f32 %v1434, %v1435
        %v1437 = vsel %vm1359, %v1411, 0.0
        %v1438 = vadd.f32 %v1436, %v1437
        %v1439 = vsel %vm1359, %v1412, 0.0
        %v1440 = vadd.f32 %v1438, %v1439
        %v1441 = vsel %vm1359, %v1413, 0.0
        %v1442 = vadd.f32 %v1440, %v1441
        %v1443 = vsel %vm1359, %v1414, 0.0
        %v1444 = vadd.f32 %v1442, %v1443
        %v1445 = vsel %vm1359, %v1415, 0.0
        %v1446 = vadd.f32 %v1444, %v1445
        %1447 = vadd.xlane.f32.xlu0 %v1446
        %v1448 = vpop.xlane.xlu0 %1447
        %v1449 = vrot.slane %v1448, 4
        %v1450 = vadd.f32 %v1448, %v1449
        %v1451 = vrot.slane %v1450, 2
        %v1452 = vadd.f32 %v1450, %v1451
        %v1453 = vrot.slane %v1452, 1
        %v1454 = vadd.f32 %v1452, %v1453
        %s1455 = vtos %v1454
        %vm1456 = vcmp.eq.s32.totalorder %v672, 0
        %vm1457 = vcmp.eq.s32.totalorder %v672, 1
        %v1458 = vstv %s1455
        %v1459 = vsel %vm1457, %v1458, 0.0
        %v1460 = vstv %s1399
        %v1461 = vsel %vm1456, %v1460, %v1459
        %1462 = vst [vmem:[%s207] sm:$0xff] %v1461
        %s1463 = sand.u32 %s120, 1
        %s1464 = scalar_lea.sflag [#allocation3], %s1463
        %s1465 = sand.u32 %s120, 1
        %s1466 = smul.addr %s1465, 8
        %s1467 = scalar_lea.vmem [#allocation2], %s1466
        // Predicated region
        $region37: #{tpu_custom_call.1} parent=35 // pred_check
          %p1468 = pneg %p130
        $region38: #{tpu_custom_call.1} parent=35 // pred_check_branch
          %1470 = sbr.rel (%p1468) target = $region40
        $region39: #{tpu_custom_call.1} parent=35 // pred_region
          %s1472 = ssub.s32 128, 128
          %1473 = vsyncadd %s1464, %s1472
          %s1474 = smul.addr %s18, 128
          %s1475 = scalar_lea.hbm %s4, %s1474
          %s1477 = sshll.u32 %s1467, 4
          %s1478 = int_to_ptr.vmem [resolvable:$true] %s1477
          %1480 = dma.vmem_to_hbm [thread:$0]  %s1478, 128, %s1475, %s1464
        $region40: #{tpu_custom_call.1} parent=35 // pred_fallthru
          _
      $region36: #{tpu_custom_call.1} parent=5 // pred_fallthru
        _
      %p1481 = scmp.le.s32.totalorder 2, %s13
      // Predicated region
      $region41: #{tpu_custom_call.1} parent=5 // pred_check
        %p1482 = pneg %p1481
      $region42: #{tpu_custom_call.1} parent=5 // pred_check_branch
        %1484 = sbr.rel (%p1482) target = $region44
      $region43: #{tpu_custom_call.1} parent=5 // pred_region
        %s1485 = ssub.s32 %s13, 2
        // Predicated region
        $region45: #{tpu_custom_call.1} parent=43 // pred_check
          %p1486 = pneg %p136
        $region46: #{tpu_custom_call.1} parent=43 // pred_check_branch
          %1488 = sbr.rel (%p1486) target = $region48
        $region47: #{tpu_custom_call.1} parent=43 // pred_region
          %s1489 = sand.u32 %s121, 1
          %s1490 = scalar_lea.sflag [#allocation3], %s1489
          %s1491 = sand.u32 %s121, 1
          %s1492 = smul.addr %s1491, 8
          %s1493 = scalar_lea.vmem [#allocation2], %s1492
          %1494 = dma.done %s1490, 128
        $region48: #{tpu_custom_call.1} parent=43 // pred_fallthru
          _
      $region44: #{tpu_custom_call.1} parent=5 // pred_fallthru
        _
    $region6: #{tpu_custom_call.1} parent=1 // loop_footer
      %s17 = sadd.s32 1, %s13
    $region7: #{tpu_custom_call.1} parent=1 // loop_footer_branch
      %12 = sbr.rel target = $region3
    $region8: #{tpu_custom_call.1} parent=1 // loop_exit
      _
    %1495 = vsyncpa [#allocation3], 1
    %s1496 = scalar_lea.sflag [#allocation3], 1
    %1497 = vsyncpa %s1496, 1

</llo_original>
